<compile_context>
chip_gen: v6e
topology: v6e:2x2x1
jax: 0.10.0
libtpu: 0.0.40
codegen_flags: <defaults>
</compile_context>

<pallas_src>
import functools

import jax
import jax.numpy as jnp
from jax import lax
from jax.experimental import pallas as pl
from jax.experimental.pallas import tpu as pltpu

BN_EPS = 1e-5
LANE = 128


def _round_up(n, m):
    return ((n + m - 1) // m) * m


# --------------------------------------------------------------------------
# Kernels
# --------------------------------------------------------------------------
def _conv_stats_kernel(x_ref, w_ref, h_ref, sum_ref, ssq_ref):
    """h = x @ w (bf16 MXU, f32 acc); accumulate per-column sum / sum(h^2).

    Grid = (core_groups, tiles_per_group). Each group owns its own (1,1,r_p)
    stats block (zeroed on its first inner step). No bias is added (cancelled
    by the following batch-stats BN); padded M rows of x are zero so they
    contribute nothing to the statistics.
    """
    i = pl.program_id(1)
    h = jnp.dot(x_ref[...], w_ref[...], preferred_element_type=jnp.float32)
    h_ref[...] = h.astype(h_ref.dtype)

    @pl.when(i == 0)
    def _():
        sum_ref[...] = jnp.zeros_like(sum_ref)
        ssq_ref[...] = jnp.zeros_like(ssq_ref)

    sum_ref[...] += jnp.sum(h, axis=0, keepdims=True)[None]
    ssq_ref[...] += jnp.sum(h * h, axis=0, keepdims=True)[None]


def _bn_relu_conv_stats_kernel(h_in_ref, sc_ref, sh_ref, w_ref,
                               h_out_ref, sum_ref, ssq_ref,
                               *, tile_m, tiles_per_group, m_valid):
    """a = relu(h_in*scale + shift); h_out = a @ w; accumulate BN2 stats.

    Rows >= m_valid are M-axis padding; they are masked out of the statistics
    only on tail tiles (their h_out values are garbage but sliced away later).
    """
    c = pl.program_id(0)
    i = pl.program_id(1)
    a = jnp.maximum(
        h_in_ref[...].astype(jnp.float32) * sc_ref[...] + sh_ref[...], 0.0)
    h = jnp.dot(a.astype(jnp.bfloat16), w_ref[...],
                preferred_element_type=jnp.float32)
    h_out_ref[...] = h.astype(h_out_ref.dtype)

    @pl.when(i == 0)
    def _():
        sum_ref[...] = jnp.zeros_like(sum_ref)
        ssq_ref[...] = jnp.zeros_like(ssq_ref)

    row_start = (c * tiles_per_group + i) * tile_m

    @pl.when(row_start + tile_m <= m_valid)
    def _():  # fully-valid tile (common case): unmasked statistics
        sum_ref[...] += jnp.sum(h, axis=0, keepdims=True)[None]
        ssq_ref[...] += jnp.sum(h * h, axis=0, keepdims=True)[None]

    @pl.when(row_start + tile_m > m_valid)
    def _():  # tail tile(s) only: mask padded rows out of the statistics
        row = row_start + lax.broadcasted_iota(jnp.int32, (tile_m, 1), 0)
        hm = h * (row < m_valid).astype(jnp.float32)
        sum_ref[...] += jnp.sum(hm, axis=0, keepdims=True)[None]
        ssq_ref[...] += jnp.sum(hm * hm, axis=0, keepdims=True)[None]


def _bn_relu_conv_out_kernel(h_in_ref, sc_ref, sh_ref, w_ref, y_ref):
    """y = relu(h_in*scale + shift) @ w3, written as a narrow (tile_m, 3) f32
    block. Bias b3 and the residual are added on the tiny (M, 3) result in
    the wrapper, so this DMA-bound stage streams no lane-padded slabs."""
    a = jnp.maximum(
        h_in_ref[...].astype(jnp.float32) * sc_ref[...] + sh_ref[...], 0.0)
    y_ref[...] = jnp.dot(a.astype(jnp.bfloat16), w_ref[...],
                         preferred_element_type=jnp.float32)


# --------------------------------------------------------------------------
# Helpers
# --------------------------------------------------------------------------
def _fold_bn(col_sum, col_sumsq, gamma, beta, m_valid):
    """Fold batch stats + gamma/beta into a single per-column scale/shift."""
    inv_m = 1.0 / float(m_valid)
    mu = col_sum * inv_m
    var = jnp.maximum(col_sumsq * inv_m - mu * mu, 0.0)   # biased variance
    # TODO(synk): E[h^2]-E[h]^2 in f32 can cancel for channels with extreme
    # |mean|/std at very large M; switch to shifted/Welford accumulation if
    # that regime ever matters.
    scale = gamma * lax.rsqrt(var + BN_EPS)
    shift = beta - mu * scale
    return scale, shift


def _stage_vmem_bytes(tile_m, c_in, r_p):
    """Worst-stage VMEM footprint: double-buffered row streams + weights."""
    cin_l = _round_up(c_in, LANE)
    bf = 2
    s1 = 2 * tile_m * cin_l * bf + 2 * cin_l * r_p * bf + 2 * tile_m * r_p * bf
    s2 = 4 * tile_m * r_p * bf + 2 * r_p * r_p * bf
    s3 = 2 * tile_m * r_p * bf + 2 * r_p * LANE * bf + 2 * tile_m * LANE * 4
    return max(s1, s2, s3) + (2 << 20)    # slack: params, stats, scratch


# --------------------------------------------------------------------------
# Wrapper
# --------------------------------------------------------------------------
def decoder_block_forward(inp, params, *, out_factor=200.0, residual=True,
                          tile_m=1024, num_core_groups=2):
    """inp: (B, C_in, N) float32, PyTorch NCW layout. Returns (B, 3, N)."""
    B, c_in, n_pts = inp.shape
    M = B * n_pts
    r = params["w1"].shape[1]
    r_p = _round_up(r, LANE)

    f32, bf16 = jnp.float32, jnp.bfloat16

    # ---- generation-aware tiling: budget against the smallest VMEM we might
    # run on (v7x: 64 MiB physical / 32 MiB scoped; v5e scoped default is only
    # 16 MiB) and raise the scoped limit explicitly on every stage. ----------
    try:
        vmem_cap = int(pltpu.get_tpu_info().vmem_capacity_bytes)
    except Exception:
        vmem_cap = 64 * 1024 * 1024            # assume the smallest (v7x)
    vmem_budget = int(vmem_cap * 0.6)

    tm = min(int(tile_m), _round_up(M, 16))
    tm = (tm // 256) * 256 if tm >= 256 else _round_up(max(tm, 16), 16)
    while tm > 256 and _stage_vmem_bytes(tm, c_in, r_p) > vmem_budget:
        tm -= 256
    tile_m = tm
    vmem_limit = int(min(vmem_cap * 0.75,
                         max(32 * 1024 * 1024,
                             2 * _stage_vmem_bytes(tile_m, c_in, r_p))))

    n_tiles = _round_up(M, tile_m) // tile_m
    groups = num_core_groups if n_tiles >= num_core_groups else 1
    tiles_per_group = _round_up(n_tiles, groups) // groups
    n_tiles = groups * tiles_per_group
    m_pad = n_tiles * tile_m

    # NCW -> (M, C) channels-last rows.  c_in is deliberately NOT lane-padded
    # (a block whose last dim equals the full array dim is legal), so stage 1
    # streams no padded-lane bytes.
    # TODO(synk): a channels-last (B, N, C) producer would remove this
    # transpose (one extra HBM pass in XLA) entirely.
    x2d = jnp.transpose(inp, (0, 2, 1)).reshape(M, c_in).astype(f32)
    x_p = jnp.pad(x2d, ((0, m_pad - M), (0, 0))).astype(bf16)

    # Pad the res_size channel dim to 128; cast MXU operands to bf16.
    w1 = jnp.pad(params["w1"].astype(f32), ((0, 0), (0, r_p - r))).astype(bf16)
    w2 = jnp.pad(params["w2"].astype(f32),
                 ((0, r_p - r), (0, r_p - r))).astype(bf16)
    w3 = jnp.pad(params["w3"].astype(f32), ((0, r_p - r), (0, 0))).astype(bf16)
    g1 = jnp.pad(params["g1"].astype(f32), ((0, 0), (0, r_p - r)))
    be1 = jnp.pad(params["be1"].astype(f32), ((0, 0), (0, r_p - r)))
    g2 = jnp.pad(params["g2"].astype(f32), ((0, 0), (0, r_p - r)))
    be2 = jnp.pad(params["be2"].astype(f32), ((0, 0), (0, r_p - r)))
    # NOTE: b1/b2 intentionally unused (batch-stats BN cancels them exactly).

    def row_spec(cols):
        return pl.BlockSpec((tile_m, cols),
                            lambda c, i: (c * tiles_per_group + i, 0))

    def const_spec(shape):
        return pl.BlockSpec(shape, lambda c, i: (0,) * len(shape))

    def stats_spec():
        return pl.BlockSpec((1, 1, r_p), lambda c, i: (c, 0, 0))

    stats_shape = jax.ShapeDtypeStruct((groups, 1, r_p), f32)
    mosaic_12 = pltpu.CompilerParams(
        dimension_semantics=("parallel", "arbitrary"),
        vmem_limit_bytes=vmem_limit)

    # ---- stage 1: conv1 (no bias) + BN1 per-group column statistics --------
    h1, s1, q1 = pl.pallas_call(
        _conv_stats_kernel,
        grid=(groups, tiles_per_group),
        in_specs=[row_spec(c_in), const_spec((c_in, r_p))],
        out_specs=(row_spec(r_p), stats_spec(), stats_spec()),
        out_shape=(jax.ShapeDtypeStruct((m_pad, r_p), bf16),
                   stats_shape, stats_shape),
        compiler_params=mosaic_12,
        cost_estimate=pl.CostEstimate(
            flops=2 * m_pad * c_in * r_p + 3 * m_pad * r_p,
            transcendentals=0,
            bytes_accessed=2 * (m_pad * c_in + c_in * r_p + m_pad * r_p)),
    )(x_p, w1)

    sc1, sh1 = _fold_bn(jnp.sum(s1, axis=0), jnp.sum(q1, axis=0), g1, be1, M)

    # ---- stage 2: BN1 + ReLU + conv2 (no bias) + BN2 statistics ------------
    kern2 = functools.partial(_bn_relu_conv_stats_kernel, tile_m=tile_m,
                              tiles_per_group=tiles_per_group, m_valid=M)
    h2, s2, q2 = pl.pallas_call(
        kern2,
        grid=(groups, tiles_per_group),
        in_specs=[row_spec(r_p), const_spec((1, r_p)), const_spec((1, r_p)),
                  const_spec((r_p, r_p))],
        out_specs=(row_spec(r_p), stats_spec(), stats_spec()),
        out_shape=(jax.ShapeDtypeStruct((m_pad, r_p), bf16),
                   stats_shape, stats_shape),
        compiler_params=mosaic_12,
        cost_estimate=pl.CostEstimate(
            flops=2 * m_pad * r_p * r_p + 8 * m_pad * r_p,
            transcendentals=0,
            bytes_accessed=2 * (2 * m_pad * r_p + r_p * r_p)),
    )(h1, sc1, sh1, w2)

    sc2, sh2 = _fold_bn(jnp.sum(s2, axis=0), jnp.sum(q2, axis=0), g2, be2, M)

    # ---- stage 3: BN2 + ReLU + conv3 -> narrow (M, 3) f32 output ------------
    y_p = pl.pallas_call(
        _bn_relu_conv_out_kernel,
        grid=(n_tiles,),
        in_specs=[pl.BlockSpec((tile_m, r_p), lambda i: (i, 0)),
                  pl.BlockSpec((1, r_p), lambda i: (0, 0)),
                  pl.BlockSpec((1, r_p), lambda i: (0, 0)),
                  pl.BlockSpec((r_p, 3), lambda i: (0, 0))],
        out_specs=pl.BlockSpec((tile_m, 3), lambda i: (i, 0)),
        out_shape=jax.ShapeDtypeStruct((m_pad, 3), f32),
        compiler_params=pltpu.CompilerParams(
            dimension_semantics=("parallel",),
            vmem_limit_bytes=vmem_limit),
        cost_estimate=pl.CostEstimate(
            flops=2 * m_pad * r_p * 3 + 4 * m_pad * r_p,
            transcendentals=0,
            bytes_accessed=2 * (m_pad * r_p + r_p * 3) + 4 * m_pad * 3),
    )(h2, sc2, sh2, w3)

    # Bias + residual on the tiny (M, 3) slab in exact f32; restore NCW.
    y = y_p[:M] + params["b3"].astype(f32)
    if residual:
        y = y + x2d[:, :3] * out_factor
    return jnp.transpose(y.reshape(B, n_pts, 3), (0, 2, 1))


# --------------------------------------------------------------------------
# Pure-JAX reference (mirrors the PyTorch training-mode forward, incl. b1/b2)
# --------------------------------------------------------------------------
def decoder_block_reference(inp, params, *, out_factor=200.0, residual=True):
    B, C, N = inp.shape
    x = jnp.transpose(inp, (0, 2, 1)).reshape(B * N, C)

    def bn(h, g, b):
        mu = jnp.mean(h, axis=0, keepdims=True)
        var = jnp.mean((h - mu) ** 2, axis=0, keepdims=True)  # biased
        return (h - mu) * lax.rsqrt(var + BN_EPS) * g + b

    h = jnp.maximum(bn(x @ params["w1"] + params["b1"],
                       params["g1"], params["be1"]), 0.0)
    h = jnp.maximum(bn(h @ params["w2"] + params["b2"],
                       params["g2"], params["be2"]), 0.0)
    y = h @ params["w3"] + params["b3"]
    if residual:
        y = y + x[:, :3] * out_factor
    return jnp.transpose(y.reshape(B, N, 3), (0, 2, 1))


# --------------------------------------------------------------------------
# Parameters
# --------------------------------------------------------------------------
def init_params(key, bottleneck_size, res_size):
    """Deterministic synthetic parameters (shapes match the PyTorch module)."""
    ks = jax.random.split(key, 10)

    def conv_w(k, cin, cout):
        bound = 1.0 / jnp.sqrt(cin)
        return jax.random.uniform(k, (cin, cout), jnp.float32, -bound, bound)

    def conv_b(k, cin, cout):
        bound = 1.0 / jnp.sqrt(cin)
        return jax.random.uniform(k, (1, cout), jnp.float32, -bound, bound)

    return {
        "w1": conv_w(ks[0], bottleneck_size, res_size),
        "b1": conv_b(ks[1], bottleneck_size, res_size),  # dead in kernel (BN)
        "g1": jax.random.uniform(ks[2], (1, res_size), jnp.float32, 0.5, 1.5),
        "be1": 0.1 * jax.random.normal(ks[3], (1, res_size), jnp.float32),
        "w2": conv_w(ks[4], res_size, res_size),
        "b2": conv_b(ks[5], res_size, res_size),          # dead in kernel (BN)
        "g2": jax.random.uniform(ks[6], (1, res_size), jnp.float32, 0.5, 1.5),
        "be2": 0.1 * jax.random.normal(ks[7], (1, res_size), jnp.float32),
        "w3": conv_w(ks[8], res_size, 3),
        "b3": conv_b(ks[9], res_size, 3),
    }


if __name__ == "__main__":
    # Small shapes consistent with the module's forward:
    #   inp: (batch, bottleneck_size, num_points)
    B, BOTTLENECK, N_POINTS = 2, 32, 24
    RES_SIZE = 32
    OUT_FACTOR = 200.0

    key = jax.random.PRNGKey(0)
    k_in, k_par = jax.random.split(key)
    inp = jax.random.normal(k_in, (B, BOTTLENECK, N_POINTS), jnp.float32)
    params = init_params(k_par, BOTTLENECK, RES_SIZE)

    # tiny tile_m -> M=48 splits into 2 core groups x 2 tiles (one tail tile
    # fully padded), exercising the multi-group stats, the cross-tile
    # accumulation and the masked-tail code paths.
    fwd = jax.jit(functools.partial(decoder_block_forward,
                                    out_factor=OUT_FACTOR, residual=True,
                                    tile_m=16))
    out = jax.block_until_ready(fwd(inp, params))
    assert out.shape == (B, 3, N_POINTS), out.shape

    ref = decoder_block_reference(inp, params, out_factor=OUT_FACTOR,
                                  residual=True)
    err = float(jnp.max(jnp.abs(out - ref)))
    assert err < 0.25, f"max abs error vs reference: {err}"

    print("KERNEL_OK")
</pallas_src>

<mosaic_0001>
module attributes {stable_mosaic.version = 11 : i64} {
  func.func @_conv_stats_kernel(%arg0: i32, %arg1: i32, %arg2: memref<16x32xbf16, #tpu.memory_space<vmem>>, %arg3: memref<32x128xbf16, #tpu.memory_space<vmem>>, %arg4: memref<16x128xbf16, #tpu.memory_space<vmem>>, %arg5: memref<1x1x128xf32, #tpu.memory_space<vmem>>, %arg6: memref<1x1x128xf32, #tpu.memory_space<vmem>>) attributes {dimension_semantics = [#tpu.dimension_semantics<parallel>, #tpu.dimension_semantics<arbitrary>], iteration_bounds = array<i64: 2, 2>, scalar_prefetch = 0 : i64, scratch_operands = 0 : i64, tpu.core_type = #tpu.core_type<tc>, window_params = [{transform_indices = @transform_0, window_bounds = array<i64: 16, 32>}, {pipeline_mode = #tpu.pipeline_mode<synchronous>, transform_indices = @transform_1, window_bounds = array<i64: 32, 128>}, {transform_indices = @transform_2, window_bounds = array<i64: 16, 128>}, {transform_indices = @transform_3, window_bounds = array<i64: 1, 1, 128>}, {transform_indices = @transform_4, window_bounds = array<i64: 1, 1, 128>}]} {
    %c0 = arith.constant 0 : index
    %c0_0 = arith.constant 0 : index
    %0 = vector.load %arg2[%c0, %c0_0] : memref<16x32xbf16, #tpu.memory_space<vmem>>, vector<16x32xbf16>
    %c0_1 = arith.constant 0 : index
    %c0_2 = arith.constant 0 : index
    %1 = vector.load %arg3[%c0_1, %c0_2] : memref<32x128xbf16, #tpu.memory_space<vmem>>, vector<32x128xbf16>
    %cst = arith.constant dense<0.000000e+00> : vector<16x128xf32>
    %2 = tpu.matmul %0, %1, %cst {dimension_numbers = #tpu.dot_dimension_numbers<[1], [0], [0], [1], [0, 0, 1, 1], [], []>} : vector<16x32xbf16>, vector<32x128xbf16>, vector<16x128xf32> -> vector<16x128xf32>
    %3 = arith.truncf %2 : vector<16x128xf32> to vector<16x128xbf16>
    %c0_3 = arith.constant 0 : index
    %c0_4 = arith.constant 0 : index
    %4 = vector.load %arg4[%c0_3, %c0_4] : memref<16x128xbf16, #tpu.memory_space<vmem>>, vector<16x128xbf16>
    tpu.vector_store %arg4[%c0_3, %c0_4], %3 {strides = array<i32>} : memref<16x128xbf16, #tpu.memory_space<vmem>>, vector<16x128xbf16>,
    %c0_i32 = arith.constant 0 : i32
    %5 = arith.cmpi eq, %arg1, %c0_i32 : i32
    %6 = arith.extui %5 : i1 to i32
    %c0_i32_5 = arith.constant 0 : i32
    %7 = arith.cmpi ne, %6, %c0_i32_5 : i32
    scf.if %7 {
      %cst_20 = arith.constant 0.000000e+00 : f32
      %21 = vector.broadcast %cst_20 : f32 to vector<1x1x128xf32>
      %c0_21 = arith.constant 0 : index
      %c0_22 = arith.constant 0 : index
      %c0_23 = arith.constant 0 : index
      %22 = vector.load %arg5[%c0_21, %c0_22, %c0_23] : memref<1x1x128xf32, #tpu.memory_space<vmem>>, vector<1x1x128xf32>
      tpu.vector_store %arg5[%c0_21, %c0_22, %c0_23], %21 {strides = array<i32>} : memref<1x1x128xf32, #tpu.memory_space<vmem>>, vector<1x1x128xf32>,
      %cst_24 = arith.constant 0.000000e+00 : f32
      %23 = vector.broadcast %cst_24 : f32 to vector<1x1x128xf32>
      %c0_25 = arith.constant 0 : index
      %c0_26 = arith.constant 0 : index
      %c0_27 = arith.constant 0 : index
      %24 = vector.load %arg6[%c0_25, %c0_26, %c0_27] : memref<1x1x128xf32, #tpu.memory_space<vmem>>, vector<1x1x128xf32>
      tpu.vector_store %arg6[%c0_25, %c0_26, %c0_27], %23 {strides = array<i32>} : memref<1x1x128xf32, #tpu.memory_space<vmem>>, vector<1x1x128xf32>,
    } else {
    }
    %c0_6 = arith.constant 0 : index
    %c0_7 = arith.constant 0 : index
    %c0_8 = arith.constant 0 : index
    %8 = vector.load %arg5[%c0_6, %c0_7, %c0_8] : memref<1x1x128xf32, #tpu.memory_space<vmem>>, vector<1x1x128xf32>
    %cst_9 = arith.constant dense<0.000000e+00> : vector<128xf32>
    %9 = vector.multi_reduction <add>, %2, %cst_9 [0] : vector<16x128xf32> to vector<128xf32>
    %10 = vector.shape_cast %9 : vector<128xf32> to vector<1x128xf32>
    %11 = vector.shape_cast %10 : vector<1x128xf32> to vector<1x1x128xf32>
    %12 = arith.addf %8, %11 : vector<1x1x128xf32>
    %c0_10 = arith.constant 0 : index
    %c0_11 = arith.constant 0 : index
    %c0_12 = arith.constant 0 : index
    %13 = vector.load %arg5[%c0_10, %c0_11, %c0_12] : memref<1x1x128xf32, #tpu.memory_space<vmem>>, vector<1x1x128xf32>
    tpu.vector_store %arg5[%c0_10, %c0_11, %c0_12], %12 {strides = array<i32>} : memref<1x1x128xf32, #tpu.memory_space<vmem>>, vector<1x1x128xf32>,
    %c0_13 = arith.constant 0 : index
    %c0_14 = arith.constant 0 : index
    %c0_15 = arith.constant 0 : index
    %14 = vector.load %arg6[%c0_13, %c0_14, %c0_15] : memref<1x1x128xf32, #tpu.memory_space<vmem>>, vector<1x1x128xf32>
    %15 = arith.mulf %2, %2 : vector<16x128xf32>
    %cst_16 = arith.constant dense<0.000000e+00> : vector<128xf32>
    %16 = vector.multi_reduction <add>, %15, %cst_16 [0] : vector<16x128xf32> to vector<128xf32>
    %17 = vector.shape_cast %16 : vector<128xf32> to vector<1x128xf32>
    %18 = vector.shape_cast %17 : vector<1x128xf32> to vector<1x1x128xf32>
    %19 = arith.addf %14, %18 : vector<1x1x128xf32>
    %c0_17 = arith.constant 0 : index
    %c0_18 = arith.constant 0 : index
    %c0_19 = arith.constant 0 : index
    %20 = vector.load %arg6[%c0_17, %c0_18, %c0_19] : memref<1x1x128xf32, #tpu.memory_space<vmem>>, vector<1x1x128xf32>
    tpu.vector_store %arg6[%c0_17, %c0_18, %c0_19], %19 {strides = array<i32>} : memref<1x1x128xf32, #tpu.memory_space<vmem>>, vector<1x1x128xf32>,
    return
  }
  func.func @transform_0(%arg0: i32, %arg1: i32) -> (i32, i32) {
    %c2_i32 = arith.constant 2 : i32
    %0 = arith.muli %arg0, %c2_i32 : i32
    %1 = arith.addi %0, %arg1 : i32
    %c0_i32 = arith.constant 0 : i32
    %c0_i32_0 = arith.constant 0 : i32
    return %1, %c0_i32 : i32, i32
  }
  func.func @transform_1(%arg0: i32, %arg1: i32) -> (i32, i32) {
    %c0_i32 = arith.constant 0 : i32
    %c0_i32_0 = arith.constant 0 : i32
    %c0_i32_1 = arith.constant 0 : i32
    return %c0_i32, %c0_i32_0 : i32, i32
  }
  func.func @transform_2(%arg0: i32, %arg1: i32) -> (i32, i32) {
    %c2_i32 = arith.constant 2 : i32
    %0 = arith.muli %arg0, %c2_i32 : i32
    %1 = arith.addi %0, %arg1 : i32
    %c0_i32 = arith.constant 0 : i32
    %c0_i32_0 = arith.constant 0 : i32
    return %1, %c0_i32 : i32, i32
  }
  func.func @transform_3(%arg0: i32, %arg1: i32) -> (i32, i32, i32) {
    %c0_i32 = arith.constant 0 : i32
    %c0_i32_0 = arith.constant 0 : i32
    %c0_i32_1 = arith.constant 0 : i32
    return %arg0, %c0_i32, %c0_i32_0 : i32, i32, i32
  }
  func.func @transform_4(%arg0: i32, %arg1: i32) -> (i32, i32, i32) {
    %c0_i32 = arith.constant 0 : i32
    %c0_i32_0 = arith.constant 0 : i32
    %c0_i32_1 = arith.constant 0 : i32
    return %arg0, %c0_i32, %c0_i32_0 : i32, i32, i32
  }
}

module attributes {stable_mosaic.version = 11 : i64} {
  func.func @_bn_relu_conv_out_kernel(%arg0: i32, %arg1: memref<16x128xbf16, #tpu.memory_space<vmem>>, %arg2: memref<1x128xf32, #tpu.memory_space<vmem>>, %arg3: memref<1x128xf32, #tpu.memory_space<vmem>>, %arg4: memref<128x3xbf16, #tpu.memory_space<vmem>>, %arg5: memref<16x3xf32, #tpu.memory_space<vmem>>) attributes {dimension_semantics = [#tpu.dimension_semantics<parallel>], iteration_bounds = array<i64: 4>, scalar_prefetch = 0 : i64, scratch_operands = 0 : i64, tpu.core_type = #tpu.core_type<tc>, window_params = [{transform_indices = @transform_0, window_bounds = array<i64: 16, 128>}, {pipeline_mode = #tpu.pipeline_mode<synchronous>, transform_indices = @transform_1, window_bounds = array<i64: 1, 128>}, {pipeline_mode = #tpu.pipeline_mode<synchronous>, transform_indices = @transform_2, window_bounds = array<i64: 1, 128>}, {pipeline_mode = #tpu.pipeline_mode<synchronous>, transform_indices = @transform_3, window_bounds = array<i64: 128, 3>}, {transform_indices = @transform_4, window_bounds = array<i64: 16, 3>}]} {
    %c0 = arith.constant 0 : index
    %c0_0 = arith.constant 0 : index
    %0 = vector.load %arg1[%c0, %c0_0] : memref<16x128xbf16, #tpu.memory_space<vmem>>, vector<16x128xbf16>
    %1 = arith.extf %0 : vector<16x128xbf16> to vector<16x128xf32>
    %c0_1 = arith.constant 0 : index
    %c0_2 = arith.constant 0 : index
    %2 = vector.load %arg2[%c0_1, %c0_2] : memref<1x128xf32, #tpu.memory_space<vmem>>, vector<1x128xf32>
    %3 = vector.broadcast %2 : vector<1x128xf32> to vector<16x128xf32>
    %4 = arith.mulf %1, %3 : vector<16x128xf32>
    %c0_3 = arith.constant 0 : index
    %c0_4 = arith.constant 0 : index
    %5 = vector.load %arg3[%c0_3, %c0_4] : memref<1x128xf32, #tpu.memory_space<vmem>>, vector<1x128xf32>
    %6 = vector.broadcast %5 : vector<1x128xf32> to vector<16x128xf32>
    %7 = arith.addf %4, %6 : vector<16x128xf32>
    %cst = arith.constant 0.000000e+00 : f32
    %8 = vector.broadcast %cst : f32 to vector<16x128xf32>
    %9 = arith.maximumf %7, %8 : vector<16x128xf32>
    %10 = arith.truncf %9 : vector<16x128xf32> to vector<16x128xbf16>
    %c0_5 = arith.constant 0 : index
    %c0_6 = arith.constant 0 : index
    %11 = vector.load %arg4[%c0_5, %c0_6] : memref<128x3xbf16, #tpu.memory_space<vmem>>, vector<128x3xbf16>
    %cst_7 = arith.constant dense<0.000000e+00> : vector<16x3xf32>
    %12 = tpu.matmul %10, %11, %cst_7 {dimension_numbers = #tpu.dot_dimension_numbers<[1], [0], [0], [1], [0, 0, 1, 1], [], []>} : vector<16x128xbf16>, vector<128x3xbf16>, vector<16x3xf32> -> vector<16x3xf32>
    %c0_8 = arith.constant 0 : index
    %c0_9 = arith.constant 0 : index
    %13 = vector.load %arg5[%c0_8, %c0_9] : memref<16x3xf32, #tpu.memory_space<vmem>>, vector<16x3xf32>
    tpu.vector_store %arg5[%c0_8, %c0_9], %12 {strides = array<i32>} : memref<16x3xf32, #tpu.memory_space<vmem>>, vector<16x3xf32>,
    return
  }
  func.func @transform_0(%arg0: i32) -> (i32, i32) {
    %c0_i32 = arith.constant 0 : i32
    %c0_i32_0 = arith.constant 0 : i32
    return %arg0, %c0_i32 : i32, i32
  }
  func.func @transform_1(%arg0: i32) -> (i32, i32) {
    %c0_i32 = arith.constant 0 : i32
    %c0_i32_0 = arith.constant 0 : i32
    %c0_i32_1 = arith.constant 0 : i32
    return %c0_i32, %c0_i32_0 : i32, i32
  }
  func.func @transform_2(%arg0: i32) -> (i32, i32) {
    %c0_i32 = arith.constant 0 : i32
    %c0_i32_0 = arith.constant 0 : i32
    %c0_i32_1 = arith.constant 0 : i32
    return %c0_i32, %c0_i32_0 : i32, i32
  }
  func.func @transform_3(%arg0: i32) -> (i32, i32) {
    %c0_i32 = arith.constant 0 : i32
    %c0_i32_0 = arith.constant 0 : i32
    %c0_i32_1 = arith.constant 0 : i32
    return %c0_i32, %c0_i32_0 : i32, i32
  }
  func.func @transform_4(%arg0: i32) -> (i32, i32) {
    %c0_i32 = arith.constant 0 : i32
    %c0_i32_0 = arith.constant 0 : i32
    return %arg0, %c0_i32 : i32, i32
  }
}

module attributes {stable_mosaic.version = 11 : i64} {
  func.func @_bn_relu_conv_stats_kernel(%arg0: i32, %arg1: i32, %arg2: memref<16x128xbf16, #tpu.memory_space<vmem>>, %arg3: memref<1x128xf32, #tpu.memory_space<vmem>>, %arg4: memref<1x128xf32, #tpu.memory_space<vmem>>, %arg5: memref<128x128xbf16, #tpu.memory_space<vmem>>, %arg6: memref<16x128xbf16, #tpu.memory_space<vmem>>, %arg7: memref<1x1x128xf32, #tpu.memory_space<vmem>>, %arg8: memref<1x1x128xf32, #tpu.memory_space<vmem>>) attributes {dimension_semantics = [#tpu.dimension_semantics<parallel>, #tpu.dimension_semantics<arbitrary>], iteration_bounds = array<i64: 2, 2>, scalar_prefetch = 0 : i64, scratch_operands = 0 : i64, tpu.core_type = #tpu.core_type<tc>, window_params = [{transform_indices = @transform_0, window_bounds = array<i64: 16, 128>}, {pipeline_mode = #tpu.pipeline_mode<synchronous>, transform_indices = @transform_1, window_bounds = array<i64: 1, 128>}, {pipeline_mode = #tpu.pipeline_mode<synchronous>, transform_indices = @transform_2, window_bounds = array<i64: 1, 128>}, {pipeline_mode = #tpu.pipeline_mode<synchronous>, transform_indices = @transform_3, window_bounds = array<i64: 128, 128>}, {transform_indices = @transform_4, window_bounds = array<i64: 16, 128>}, {transform_indices = @transform_5, window_bounds = array<i64: 1, 1, 128>}, {transform_indices = @transform_6, window_bounds = array<i64: 1, 1, 128>}]} {
    %c0 = arith.constant 0 : index
    %c0_0 = arith.constant 0 : index
    %0 = vector.load %arg2[%c0, %c0_0] : memref<16x128xbf16, #tpu.memory_space<vmem>>, vector<16x128xbf16>
    %1 = arith.extf %0 : vector<16x128xbf16> to vector<16x128xf32>
    %c0_1 = arith.constant 0 : index
    %c0_2 = arith.constant 0 : index
    %2 = vector.load %arg3[%c0_1, %c0_2] : memref<1x128xf32, #tpu.memory_space<vmem>>, vector<1x128xf32>
    %3 = vector.broadcast %2 : vector<1x128xf32> to vector<16x128xf32>
    %4 = arith.mulf %1, %3 : vector<16x128xf32>
    %c0_3 = arith.constant 0 : index
    %c0_4 = arith.constant 0 : index
    %5 = vector.load %arg4[%c0_3, %c0_4] : memref<1x128xf32, #tpu.memory_space<vmem>>, vector<1x128xf32>
    %6 = vector.broadcast %5 : vector<1x128xf32> to vector<16x128xf32>
    %7 = arith.addf %4, %6 : vector<16x128xf32>
    %cst = arith.constant 0.000000e+00 : f32
    %8 = vector.broadcast %cst : f32 to vector<16x128xf32>
    %9 = arith.maximumf %7, %8 : vector<16x128xf32>
    %10 = arith.truncf %9 : vector<16x128xf32> to vector<16x128xbf16>
    %c0_5 = arith.constant 0 : index
    %c0_6 = arith.constant 0 : index
    %11 = vector.load %arg5[%c0_5, %c0_6] : memref<128x128xbf16, #tpu.memory_space<vmem>>, vector<128x128xbf16>
    %cst_7 = arith.constant dense<0.000000e+00> : vector<16x128xf32>
    %12 = tpu.matmul %10, %11, %cst_7 {dimension_numbers = #tpu.dot_dimension_numbers<[1], [0], [0], [1], [0, 0, 1, 1], [], []>} : vector<16x128xbf16>, vector<128x128xbf16>, vector<16x128xf32> -> vector<16x128xf32>
    %13 = arith.truncf %12 : vector<16x128xf32> to vector<16x128xbf16>
    %c0_8 = arith.constant 0 : index
    %c0_9 = arith.constant 0 : index
    %14 = vector.load %arg6[%c0_8, %c0_9] : memref<16x128xbf16, #tpu.memory_space<vmem>>, vector<16x128xbf16>
    tpu.vector_store %arg6[%c0_8, %c0_9], %13 {strides = array<i32>} : memref<16x128xbf16, #tpu.memory_space<vmem>>, vector<16x128xbf16>,
    %c0_i32 = arith.constant 0 : i32
    %15 = arith.cmpi eq, %arg1, %c0_i32 : i32
    %16 = arith.extui %15 : i1 to i32
    %c0_i32_10 = arith.constant 0 : i32
    %17 = arith.cmpi ne, %16, %c0_i32_10 : i32
    scf.if %17 {
      %cst_16 = arith.constant 0.000000e+00 : f32
      %29 = vector.broadcast %cst_16 : f32 to vector<1x1x128xf32>
      %c0_17 = arith.constant 0 : index
      %c0_18 = arith.constant 0 : index
      %c0_19 = arith.constant 0 : index
      %30 = vector.load %arg7[%c0_17, %c0_18, %c0_19] : memref<1x1x128xf32, #tpu.memory_space<vmem>>, vector<1x1x128xf32>
      tpu.vector_store %arg7[%c0_17, %c0_18, %c0_19], %29 {strides = array<i32>} : memref<1x1x128xf32, #tpu.memory_space<vmem>>, vector<1x1x128xf32>,
      %cst_20 = arith.constant 0.000000e+00 : f32
      %31 = vector.broadcast %cst_20 : f32 to vector<1x1x128xf32>
      %c0_21 = arith.constant 0 : index
      %c0_22 = arith.constant 0 : index
      %c0_23 = arith.constant 0 : index
      %32 = vector.load %arg8[%c0_21, %c0_22, %c0_23] : memref<1x1x128xf32, #tpu.memory_space<vmem>>, vector<1x1x128xf32>
      tpu.vector_store %arg8[%c0_21, %c0_22, %c0_23], %31 {strides = array<i32>} : memref<1x1x128xf32, #tpu.memory_space<vmem>>, vector<1x1x128xf32>,
    } else {
    }
    %c2_i32 = arith.constant 2 : i32
    %18 = arith.muli %arg0, %c2_i32 : i32
    %19 = arith.addi %18, %arg1 : i32
    %c16_i32 = arith.constant 16 : i32
    %20 = arith.muli %19, %c16_i32 : i32
    %c16_i32_11 = arith.constant 16 : i32
    %21 = arith.addi %20, %c16_i32_11 : i32
    %c48_i32 = arith.constant 48 : i32
    %22 = arith.cmpi sle, %21, %c48_i32 : i32
    %23 = arith.extui %22 : i1 to i32
    %c0_i32_12 = arith.constant 0 : i32
    %24 = arith.cmpi ne, %23, %c0_i32_12 : i32
    scf.if %24 {
      %c0_16 = arith.constant 0 : index
      %c0_17 = arith.constant 0 : index
      %c0_18 = arith.constant 0 : index
      %29 = vector.load %arg7[%c0_16, %c0_17, %c0_18] : memref<1x1x128xf32, #tpu.memory_space<vmem>>, vector<1x1x128xf32>
      %cst_19 = arith.constant dense<0.000000e+00> : vector<128xf32>
      %30 = vector.multi_reduction <add>, %12, %cst_19 [0] : vector<16x128xf32> to vector<128xf32>
      %31 = vector.shape_cast %30 : vector<128xf32> to vector<1x128xf32>
      %32 = vector.shape_cast %31 : vector<1x128xf32> to vector<1x1x128xf32>
      %33 = arith.addf %29, %32 : vector<1x1x128xf32>
      %c0_20 = arith.constant 0 : index
      %c0_21 = arith.constant 0 : index
      %c0_22 = arith.constant 0 : index
      %34 = vector.load %arg7[%c0_20, %c0_21, %c0_22] : memref<1x1x128xf32, #tpu.memory_space<vmem>>, vector<1x1x128xf32>
      tpu.vector_store %arg7[%c0_20, %c0_21, %c0_22], %33 {strides = array<i32>} : memref<1x1x128xf32, #tpu.memory_space<vmem>>, vector<1x1x128xf32>,
      %c0_23 = arith.constant 0 : index
      %c0_24 = arith.constant 0 : index
      %c0_25 = arith.constant 0 : index
      %35 = vector.load %arg8[%c0_23, %c0_24, %c0_25] : memref<1x1x128xf32, #tpu.memory_space<vmem>>, vector<1x1x128xf32>
      %36 = arith.mulf %12, %12 : vector<16x128xf32>
      %cst_26 = arith.constant dense<0.000000e+00> : vector<128xf32>
      %37 = vector.multi_reduction <add>, %36, %cst_26 [0] : vector<16x128xf32> to vector<128xf32>
      %38 = vector.shape_cast %37 : vector<128xf32> to vector<1x128xf32>
      %39 = vector.shape_cast %38 : vector<1x128xf32> to vector<1x1x128xf32>
      %40 = arith.addf %35, %39 : vector<1x1x128xf32>
      %c0_27 = arith.constant 0 : index
      %c0_28 = arith.constant 0 : index
      %c0_29 = arith.constant 0 : index
      %41 = vector.load %arg8[%c0_27, %c0_28, %c0_29] : memref<1x1x128xf32, #tpu.memory_space<vmem>>, vector<1x1x128xf32>
      tpu.vector_store %arg8[%c0_27, %c0_28, %c0_29], %40 {strides = array<i32>} : memref<1x1x128xf32, #tpu.memory_space<vmem>>, vector<1x1x128xf32>,
    } else {
    }
    %c16_i32_13 = arith.constant 16 : i32
    %25 = arith.addi %20, %c16_i32_13 : i32
    %c48_i32_14 = arith.constant 48 : i32
    %26 = arith.cmpi sgt, %25, %c48_i32_14 : i32
    %27 = arith.extui %26 : i1 to i32
    %c0_i32_15 = arith.constant 0 : i32
    %28 = arith.cmpi ne, %27, %c0_i32_15 : i32
    scf.if %28 {
      %29 = tpu.iota {dimensions = array<i32: 0>} : vector<16x1xi32>
      %30 = vector.broadcast %20 : i32 to vector<16x1xi32>
      %31 = arith.addi %30, %29 : vector<16x1xi32>
      %c48_i32_16 = arith.constant 48 : i32
      %32 = vector.broadcast %c48_i32_16 : i32 to vector<16x1xi32>
      %33 = arith.cmpi slt, %31, %32 : vector<16x1xi32>
      %34 = arith.extui %33 : vector<16x1xi1> to vector<16x1xi32>
      %35 = arith.sitofp %34 : vector<16x1xi32> to vector<16x1xf32>
      %36 = vector.broadcast %35 : vector<16x1xf32> to vector<16x128xf32>
      %37 = arith.mulf %12, %36 : vector<16x128xf32>
      %c0_17 = arith.constant 0 : index
      %c0_18 = arith.constant 0 : index
      %c0_19 = arith.constant 0 : index
      %38 = vector.load %arg7[%c0_17, %c0_18, %c0_19] : memref<1x1x128xf32, #tpu.memory_space<vmem>>, vector<1x1x128xf32>
      %cst_20 = arith.constant dense<0.000000e+00> : vector<128xf32>
      %39 = vector.multi_reduction <add>, %37, %cst_20 [0] : vector<16x128xf32> to vector<128xf32>
      %40 = vector.shape_cast %39 : vector<128xf32> to vector<1x128xf32>
      %41 = vector.shape_cast %40 : vector<1x128xf32> to vector<1x1x128xf32>
      %42 = arith.addf %38, %41 : vector<1x1x128xf32>
      %c0_21 = arith.constant 0 : index
      %c0_22 = arith.constant 0 : index
      %c0_23 = arith.constant 0 : index
      %43 = vector.load %arg7[%c0_21, %c0_22, %c0_23] : memref<1x1x128xf32, #tpu.memory_space<vmem>>, vector<1x1x128xf32>
      tpu.vector_store %arg7[%c0_21, %c0_22, %c0_23], %42 {strides = array<i32>} : memref<1x1x128xf32, #tpu.memory_space<vmem>>, vector<1x1x128xf32>,
      %c0_24 = arith.constant 0 : index
      %c0_25 = arith.constant 0 : index
      %c0_26 = arith.constant 0 : index
      %44 = vector.load %arg8[%c0_24, %c0_25, %c0_26] : memref<1x1x128xf32, #tpu.memory_space<vmem>>, vector<1x1x128xf32>
      %45 = arith.mulf %37, %37 : vector<16x128xf32>
      %cst_27 = arith.constant dense<0.000000e+00> : vector<128xf32>
      %46 = vector.multi_reduction <add>, %45, %cst_27 [0] : vector<16x128xf32> to vector<128xf32>
      %47 = vector.shape_cast %46 : vector<128xf32> to vector<1x128xf32>
      %48 = vector.shape_cast %47 : vector<1x128xf32> to vector<1x1x128xf32>
      %49 = arith.addf %44, %48 : vector<1x1x128xf32>
      %c0_28 = arith.constant 0 : index
      %c0_29 = arith.constant 0 : index
      %c0_30 = arith.constant 0 : index
      %50 = vector.load %arg8[%c0_28, %c0_29, %c0_30] : memref<1x1x128xf32, #tpu.memory_space<vmem>>, vector<1x1x128xf32>
      tpu.vector_store %arg8[%c0_28, %c0_29, %c0_30], %49 {strides = array<i32>} : memref<1x1x128xf32, #tpu.memory_space<vmem>>, vector<1x1x128xf32>,
    } else {
    }
    return
  }
  func.func @transform_0(%arg0: i32, %arg1: i32) -> (i32, i32) {
    %c2_i32 = arith.constant 2 : i32
    %0 = arith.muli %arg0, %c2_i32 : i32
    %1 = arith.addi %0, %arg1 : i32
    %c0_i32 = arith.constant 0 : i32
    %c0_i32_0 = arith.constant 0 : i32
    return %1, %c0_i32 : i32, i32
  }
  func.func @transform_1(%arg0: i32, %arg1: i32) -> (i32, i32) {
    %c0_i32 = arith.constant 0 : i32
    %c0_i32_0 = arith.constant 0 : i32
    %c0_i32_1 = arith.constant 0 : i32
    return %c0_i32, %c0_i32_0 : i32, i32
  }
  func.func @transform_2(%arg0: i32, %arg1: i32) -> (i32, i32) {
    %c0_i32 = arith.constant 0 : i32
    %c0_i32_0 = arith.constant 0 : i32
    %c0_i32_1 = arith.constant 0 : i32
    return %c0_i32, %c0_i32_0 : i32, i32
  }
  func.func @transform_3(%arg0: i32, %arg1: i32) -> (i32, i32) {
    %c0_i32 = arith.constant 0 : i32
    %c0_i32_0 = arith.constant 0 : i32
    %c0_i32_1 = arith.constant 0 : i32
    return %c0_i32, %c0_i32_0 : i32, i32
  }
  func.func @transform_4(%arg0: i32, %arg1: i32) -> (i32, i32) {
    %c2_i32 = arith.constant 2 : i32
    %0 = arith.muli %arg0, %c2_i32 : i32
    %1 = arith.addi %0, %arg1 : i32
    %c0_i32 = arith.constant 0 : i32
    %c0_i32_0 = arith.constant 0 : i32
    return %1, %c0_i32 : i32, i32
  }
  func.func @transform_5(%arg0: i32, %arg1: i32) -> (i32, i32, i32) {
    %c0_i32 = arith.constant 0 : i32
    %c0_i32_0 = arith.constant 0 : i32
    %c0_i32_1 = arith.constant 0 : i32
    return %arg0, %c0_i32, %c0_i32_0 : i32, i32, i32
  }
  func.func @transform_6(%arg0: i32, %arg1: i32) -> (i32, i32, i32) {
    %c0_i32 = arith.constant 0 : i32
    %c0_i32_0 = arith.constant 0 : i32
    %c0_i32_1 = arith.constant 0 : i32
    return %arg0, %c0_i32, %c0_i32_0 : i32, i32, i32
  }
}

</mosaic_0001>

<llo_original>
// kernel: decoder_block_forward.3
$region0: #{decoder_block_forward.3}
  #allocation0 [shape = 'u32[]', space=smem, size = 0x4, offset = 0x4, fixed_abs, tag = 'smem constant byte address 0x4 - core index']
  #allocation1 [shape = 'u32[144,128]{1,0:T(1,128)}', space=vmem, size = 0x12000, scoped, tag = 'internal scratch']
  %s0 = inlined_call_operand.vmem [shape: bf16[64,32], index: 0, kind: input, shape index: {}]
  %s1 = inlined_call_operand.vmem [shape: bf16[32,128], index: 1, kind: input, shape index: {}]
  %s2 = inlined_call_operand.vmem [shape: bf16[64,128], index: 2, kind: output, shape index: {0}]
  %s3 = inlined_call_operand.vmem [shape: f32[2,1,128], index: 3, kind: output, shape index: {1}]
  %s4 = inlined_call_operand.vmem [shape: f32[2,1,128], index: 4, kind: output, shape index: {2}]
  %5 = xla_tuple %s2, %s3, %s4
  %s6 = sld [smem:[#allocation0]]
  $region61: #{decoder_block_forward.3} parent=0
    _
  %s8 = ssub.s32 1, %s6
  %s9 = scalar_select 0, %s8, %s6
  loop: start=0, step=1, limit=6
  $region2: #{decoder_block_forward.3} parent=0 // loop_pre_header
    _
  $region3: #{decoder_block_forward.3} parent=0 // loop_header
    %s11 = sphi 0, %s15
    %p12 = scmp.ge.s32.totalorder %s11, 6
    %s18 = sphi 0, %s30
    %s19 = sphi 0, %s26
    %s20 = sphi 0, %s18
    %s21 = sphi 0, %s19
    %s22 = sphi 0, %s20
    %s23 = sphi 0, %s21
    %s37 = sphi 0, %s39
    %s40 = sphi 0, %s37
    %s41 = sphi 0, %s40
    %s57 = sphi 0, %s41
    %s61 = sphi 0, %s61
    %s63 = sphi 0, %s61
    %s64 = sphi 0, %s63
    %s78 = sphi 0, %s64
    %s88 = sphi 0, %s90
    %s91 = sphi 0, %s88
    %s92 = sphi 0, %s91
    %s108 = sphi 0, %s92
    %s114 = sphi 0, %s116
    %s117 = sphi 0, %s114
    %s118 = sphi 0, %s117
    %s134 = sphi 0, %s118
    %s140 = sphi 0, %s142
    %s143 = sphi 0, %s140
    %s144 = sphi 0, %s143
    %s160 = sphi 0, %s144
  $region4: #{decoder_block_forward.3} parent=0 // loop_header_branch
    %14 = sbr.rel (%p12) target = $region8
  $region5: #{decoder_block_forward.3} parent=0 // loop_body
    %s16 = ssub.s32 %s11, 1
    %s17 = ssub.s32 %s11, 2
    %s24 = sadd.s32 1, %s19
    %p25 = scmp.ge.s32.totalorder %s24, 2
    %s26 = scalar_select %p25, 0, %s24
    %s27 = sadd.s32 1, %s18
    %s28 = scalar_select %p25, %s27, %s18
    %p29 = scmp.ge.s32.totalorder %s28, 2
    %s30 = scalar_select %p29, 0, %s28
    %s31 = smul.u32 %s18, 2
    %s32 = sadd.s32 %s31, %s19
    %s33 = smul.u32 %s30, 2
    %s34 = sadd.s32 %s33, %s26
    %s35 = ssub.s32 %s32, %s34
    %p36 = scmp.eq.s32.totalorder %s35, 0
    %s38 = sadd.s32 %s37, 1
    %s39 = scalar_select %p36, %s37, %s38
    %p42 = pneg %p36
    %p43 = scmp.eq.s32.totalorder %s11, 3
    %p44 = por %p42, %p43
    %p45 = scmp.ne.s32.totalorder %s37, %s40
    %p46 = scmp.eq.s32.totalorder %s11, 0
    %p47 = por %p45, %p46
    %p48 = scmp.ne.s32.totalorder %s37, %s40
    %p49 = scmp.eq.s32.totalorder %s16, 3
    %p50 = por %p48, %p49
    %p51 = scmp.ne.s32.totalorder %s40, %s41
    %p52 = scmp.eq.s32.totalorder %s16, 0
    %p53 = por %p51, %p52
    %p54 = scmp.ne.s32.totalorder %s40, %s41
    %p55 = scmp.eq.s32.totalorder %s17, 3
    %p56 = por %p54, %p55
    %p58 = scmp.ne.s32.totalorder %s41, %s57
    %p59 = scmp.eq.s32.totalorder %s17, 0
    %p60 = por %p58, %p59
    %s62 = sadd.s32 %s61, 1
    %p65 = scmp.eq.s32.totalorder %s11, 3
    %p66 = scmp.ne.s32.totalorder %s61, %s63
    %p67 = scmp.eq.s32.totalorder %s11, 0
    %p68 = por %p66, %p67
    %p69 = scmp.ne.s32.totalorder %s61, %s63
    %p70 = scmp.eq.s32.totalorder %s16, 3
    %p71 = por %p69, %p70
    %p72 = scmp.ne.s32.totalorder %s63, %s64
    %p73 = scmp.eq.s32.totalorder %s16, 0
    %p74 = por %p72, %p73
    %p75 = scmp.ne.s32.totalorder %s63, %s64
    %p76 = scmp.eq.s32.totalorder %s17, 3
    %p77 = por %p75, %p76
    %p79 = scmp.ne.s32.totalorder %s64, %s78
    %p80 = scmp.eq.s32.totalorder %s17, 0
    %p81 = por %p79, %p80
    %s82 = smul.u32 %s18, 2
    %s83 = sadd.s32 %s82, %s19
    %s84 = smul.u32 %s30, 2
    %s85 = sadd.s32 %s84, %s26
    %s86 = ssub.s32 %s83, %s85
    %p87 = scmp.eq.s32.totalorder %s86, 0
    %s89 = sadd.s32 %s88, 1
    %s90 = scalar_select %p87, %s88, %s89
    %p93 = pneg %p87
    %p94 = scmp.eq.s32.totalorder %s11, 3
    %p95 = por %p93, %p94
    %p96 = scmp.ne.s32.totalorder %s88, %s91
    %p97 = scmp.eq.s32.totalorder %s11, 0
    %p98 = por %p96, %p97
    %p99 = scmp.ne.s32.totalorder %s88, %s91
    %p100 = scmp.eq.s32.totalorder %s16, 3
    %p101 = por %p99, %p100
    %p102 = scmp.ne.s32.totalorder %s91, %s92
    %p103 = scmp.eq.s32.totalorder %s16, 0
    %p104 = por %p102, %p103
    %p105 = scmp.ne.s32.totalorder %s91, %s92
    %p106 = scmp.eq.s32.totalorder %s17, 3
    %p107 = por %p105, %p106
    %p109 = scmp.ne.s32.totalorder %s92, %s108
    %p110 = scmp.eq.s32.totalorder %s17, 0
    %p111 = por %p109, %p110
    %s112 = ssub.s32 %s18, %s30
    %p113 = scmp.eq.s32.totalorder %s112, 0
    %s115 = sadd.s32 %s114, 1
    %s116 = scalar_select %p113, %s114, %s115
    %p119 = pneg %p113
    %p120 = scmp.eq.s32.totalorder %s11, 3
    %p121 = por %p119, %p120
    %p122 = scmp.ne.s32.totalorder %s114, %s117
    %p123 = scmp.eq.s32.totalorder %s11, 0
    %p124 = por %p122, %p123
    %p125 = scmp.ne.s32.totalorder %s114, %s117
    %p126 = scmp.eq.s32.totalorder %s16, 3
    %p127 = por %p125, %p126
    %p128 = scmp.ne.s32.totalorder %s117, %s118
    %p129 = scmp.eq.s32.totalorder %s16, 0
    %p130 = por %p128, %p129
    %p131 = scmp.ne.s32.totalorder %s117, %s118
    %p132 = scmp.eq.s32.totalorder %s17, 3
    %p133 = por %p131, %p132
    %p135 = scmp.ne.s32.totalorder %s118, %s134
    %p136 = scmp.eq.s32.totalorder %s17, 0
    %p137 = por %p135, %p136
    %s138 = ssub.s32 %s18, %s30
    %p139 = scmp.eq.s32.totalorder %s138, 0
    %s141 = sadd.s32 %s140, 1
    %s142 = scalar_select %p139, %s140, %s141
    %p145 = pneg %p139
    %p146 = scmp.eq.s32.totalorder %s11, 3
    %p147 = por %p145, %p146
    %p148 = scmp.ne.s32.totalorder %s140, %s143
    %p149 = scmp.eq.s32.totalorder %s11, 0
    %p150 = por %p148, %p149
    %p151 = scmp.ne.s32.totalorder %s140, %s143
    %p152 = scmp.eq.s32.totalorder %s16, 3
    %p153 = por %p151, %p152
    %p154 = scmp.ne.s32.totalorder %s143, %s144
    %p155 = scmp.eq.s32.totalorder %s16, 0
    %p156 = por %p154, %p155
    %p157 = scmp.ne.s32.totalorder %s143, %s144
    %p158 = scmp.eq.s32.totalorder %s17, 3
    %p159 = por %p157, %p158
    %p161 = scmp.ne.s32.totalorder %s144, %s160
    %p162 = scmp.eq.s32.totalorder %s17, 0
    %p163 = por %p161, %p162
    %p164 = scmp.le.s32.totalorder 1, %s11
    %p165 = scmp.lt.s32.totalorder %s11, 5
    %p166 = pnand %p164, %p165
    %p167 = pneg %p166
    // Predicated region
    $region9: #{decoder_block_forward.3} parent=5 // pred_check
      _
    $region10: #{decoder_block_forward.3} parent=5 // pred_check_branch
      %169 = sbr.rel (%p166) target = $region12
    $region11: #{decoder_block_forward.3} parent=5 // pred_region
      %s170 = ssub.s32 %s11, 1
      // Predicated region
      $region13: #{decoder_block_forward.3} parent=11 // pred_check
        %p171 = pneg %p74
      $region14: #{decoder_block_forward.3} parent=11 // pred_check_branch
        %173 = sbr.rel (%p171) target = $region16
      $region15: #{decoder_block_forward.3} parent=11 // pred_region
        _
      $region16: #{decoder_block_forward.3} parent=11 // pred_fallthru
        _
    $region12: #{decoder_block_forward.3} parent=5 // pred_fallthru
      _
    %p174 = scmp.lt.s32.totalorder %s11, 4
    // Predicated region
    $region17: #{decoder_block_forward.3} parent=5 // pred_check
      %p175 = pneg %p174
    $region18: #{decoder_block_forward.3} parent=5 // pred_check_branch
      %177 = sbr.rel (%p175) target = $region20
    $region19: #{decoder_block_forward.3} parent=5 // pred_region
      // Predicated region
      $region21: #{decoder_block_forward.3} parent=19 // pred_check
        %p178 = pneg %p47
      $region22: #{decoder_block_forward.3} parent=19 // pred_check_branch
        %180 = sbr.rel (%p178) target = $region24
      $region23: #{decoder_block_forward.3} parent=19 // pred_region
        %s181 = smul.u32 %s18, 2
        %s182 = sadd.s32 %s181, %s19
        %s183 = smul.u32 2, %s182
        %p184 = scmp.lt.s32.totalorder %s183, 7
        %s185 = scalar_select %p184, %s183, 7
        %s186 = smul.addr %s185, 4
        %s187 = scalar_lea.vmem %s0, %s186
        %s188 = smul.u32 %s18, 2
        %s189 = sadd.s32 %s188, %s19
        %s190 = smul.u32 2, %s189
      $region24: #{decoder_block_forward.3} parent=19 // pred_fallthru
        _
    $region20: #{decoder_block_forward.3} parent=5 // pred_fallthru
      _
    %p191 = scmp.le.s32.totalorder 1, %s11
    %p192 = scmp.lt.s32.totalorder %s11, 5
    %p193 = pnand %p191, %p192
    %p194 = pneg %p193
    // Predicated region
    $region25: #{decoder_block_forward.3} parent=5 // pred_check
      _
    $region26: #{decoder_block_forward.3} parent=5 // pred_check_branch
      %196 = sbr.rel (%p193) target = $region28
    $region27: #{decoder_block_forward.3} parent=5 // pred_region
      %s197 = ssub.s32 %s11, 1
      %s198 = smul.u32 %s20, 2
      %s199 = sadd.s32 %s198, %s21
      %s200 = smul.u32 2, %s199
      %p201 = scmp.lt.s32.totalorder %s200, 7
      %s202 = scalar_select %p201, %s200, 7
      %s203 = smul.addr %s202, 4
      %s204 = scalar_lea.vmem %s0, %s203
      %p205 = pneg %p53
      %p206 = pneg %p50
      %p207 = pneg %p74
      %p208 = pneg %p71
      %p209 = pneg %p104
      %p210 = pneg %p101
      %s211 = smul.u32 %s20, 2
      %s212 = sadd.s32 %s211, %s21
      %s213 = smul.u32 2, %s212
      %p214 = scmp.lt.s32.totalorder %s213, 7
      %s215 = scalar_select %p214, %s213, 7
      %s216 = smul.addr %s215, 4
      %s217 = scalar_lea.vmem %s2, %s216
      %p218 = pneg %p130
      %p219 = pneg %p127
      %p220 = scmp.lt.s32.totalorder %s20, 1
      %s221 = scalar_select %p220, %s20, 1
      %s222 = scalar_lea.vmem %s3, %s221
      %p223 = pneg %p156
      %p224 = pneg %p153
      %p225 = scmp.lt.s32.totalorder %s20, 1
      %s226 = scalar_select %p225, %s20, 1
      %s227 = scalar_lea.vmem %s4, %s226
      %s228 = smul.u32 %s20, 2
      %s229 = sadd.s32 %s228, %s21
      %s230 = smul.u32 2, %s229
      %p231 = scmp.lt.s32.totalorder %s230, 7
      %s232 = scalar_select %p231, %s230, 7
      %s233 = smul.addr %s232, 4
      %s234 = scalar_lea.vmem %s0, %s233
      %s235 = smul.u32 %s20, 2
      %s236 = sadd.s32 %s235, %s21
      %s237 = smul.u32 2, %s236
      %s238 = smul.u32 %s20, 2
      %s239 = sadd.s32 %s238, %s21
      %s240 = smul.u32 2, %s239
      %p241 = scmp.lt.s32.totalorder %s240, 7
      %s242 = scalar_select %p241, %s240, 7
      %s243 = smul.addr %s242, 4
      %s244 = scalar_lea.vmem %s2, %s243
      %s245 = smul.u32 %s20, 2
      %s246 = sadd.s32 %s245, %s21
      %s247 = smul.u32 2, %s246
      %p248 = scmp.lt.s32.totalorder %s20, 1
      %s249 = scalar_select %p248, %s20, 1
      %s250 = scalar_lea.vmem %s3, %s249
      %p251 = scmp.lt.s32.totalorder %s20, 1
      %s252 = scalar_select %p251, %s20, 1
      %s253 = scalar_lea.vmem %s4, %s252
      %v255 = vld [vmem:[%s234] sm:$0xf]
      %v256 = vld [vmem:[%s234 + $0x4] sm:$0xf]
      %v257 = vld [vmem:[%s1] sm:$0xf]
      %v258 = vld [vmem:[%s1 + $0x4] sm:$0xf]
      %v259 = vld [vmem:[%s1 + $0x8] sm:$0xf]
      %v260 = vld [vmem:[%s1 + $0xc] sm:$0xf]
      %v263 = vunpack.c.l.b16 %v255
      %v264 = vunpack.c.l.b16 %v256
      %v265 = vpack.c.b16 %v264, %v263
      %v270 = vunpack.c.l.b16 %v257
      %v271 = vunpack.c.l.b16 %v258
      %v272 = vunpack.c.l.b16 %v259
      %v273 = vunpack.c.l.b16 %v260
      %v274 = vpack.c.b16 %v271, %v270
      %v275 = vpack.c.b16 %v273, %v272
      %vm278 = vcmask 261120
      %v280 = vsel %vm278, %v265, 0
      %282 = vmatprep.subr.bf16.mxu0 0
      %283 = vmatpush1.bf16.msra.mxu0 0
      %284 = vmatprep.subr.bf16.mxu0 0
      %285 = vmatpush1.bf16.msra.mxu0 0
      %286 = vmatprep.subr.bf16.mxu0 0
      %287 = vmatpush1.bf16.msra.mxu0 0
      %288 = vmatprep.subr.bf16.mxu0 0
      %289 = vmatpush1.bf16.msra.mxu0 0
      %290 = vmatprep.subr.bf16.mxu0 0
      %291 = vmatpush1.bf16.msra.mxu0 0
      %292 = vmatprep.subr.bf16.mxu0 0
      %293 = vmatpush1.bf16.msra.mxu0 0
      %294 = vmatprep.subr.bf16.mxu0 0
      %295 = vmatpush1.bf16.msra.mxu0 %v275
      %296 = vmatprep.subr.bf16.mxu0 0
      %297 = vmatpush1.bf16.msra.mxu0 %v274
      %298 = vmatprep.subr.bf16.mxu0 0
      %299 = vmatpush2.bf16.msra.mxu0 0
      %300 = vmatprep.subr.bf16.mxu0 0
      %301 = vmatpush2.bf16.msra.mxu0 0
      %302 = vmatprep.subr.bf16.mxu0 0
      %303 = vmatpush2.bf16.msra.mxu0 0
      %304 = vmatprep.subr.bf16.mxu0 0
      %305 = vmatpush2.bf16.msra.mxu0 0
      %306 = vmatprep.subr.bf16.mxu0 0
      %307 = vmatpush2.bf16.msra.mxu0 0
      %308 = vmatprep.subr.bf16.mxu0 0
      %309 = vmatpush2.bf16.msra.mxu0 0
      %310 = vmatprep.subr.bf16.mxu0 0
      %311 = vmatpush2.bf16.msra.mxu0 0
      %312 = vmatprep.subr.bf16.mxu0 0
      %313 = vmatpush2.bf16.msra.mxu0 0
      %314 = vmatprep.mubr.bf16.mxu0 0
      %315 = vmatmul.mubr.bf16.gmra.mxu0 %v280
      %v316 = vpop.f32.mrf.mxu0
      %v317 = vadd.f32 0.0, %v316
      %v318 = vpop.f32.mrf.mxu0
      %v319 = vpop.f32.mrf.mxu0
      %v320 = vadd.f32 0.0, %v319
      %v321 = vpop.f32.mrf.mxu0
      %322 = vdwg.mxu0
      %v323 = vpack.c.bf16 %v320, %v317
      %v325 = vunpack.c.l.b16 %v323
      %v326 = vunpack.c.h.b16 %v323
      %v327 = vpack.c.b16 %v325, %v325
      %v328 = vpack.c.b16 %v326, %v326
      %331 = vst [vmem:[%s244] sm:$0xf] %v327
      %332 = vst [vmem:[%s244 + $0x4] sm:$0xf] %v328
      %p333 = scmp.eq.s32.totalorder %s21, 0
      // Predicated region
      $region29: #{decoder_block_forward.3} parent=27 // pred_check
        %p334 = pneg %p333
      $region30: #{decoder_block_forward.3} parent=27 // pred_check_branch
        %336 = sbr.rel (%p334) target = $region32
      $region31: #{decoder_block_forward.3} parent=27 // pred_region
        %337 = vst [vmem:[%s250] sm:$0x1] 0.0
        %338 = vst [vmem:[%s253] sm:$0x1] 0.0
      $region32: #{decoder_block_forward.3} parent=27 // pred_fallthru
        _
      %v339 = vld [vmem:[%s250] sm:$0x1]
      %v340 = vadd.f32 %v317, %v320
      %v341 = vrot.slane %v340, 4
      %v342 = vadd.f32 %v340, %v341
      %v343 = vrot.slane %v342, 2
      %v344 = vadd.f32 %v342, %v343
      %v345 = vrot.slane %v344, 1
      %v346 = vadd.f32 %v344, %v345
      %v347 = vadd.f32 %v339, %v346
      %348 = vst [vmem:[%s250] sm:$0x1] %v347
      %v349 = vld [vmem:[%s253] sm:$0x1]
      %v350 = vmul.f32 %v317, %v317
      %v351 = vmul.f32 %v320, %v320
      %v352 = vadd.f32 %v350, %v351
      %v353 = vrot.slane %v352, 4
      %v354 = vadd.f32 %v352, %v353
      %v355 = vrot.slane %v354, 2
      %v356 = vadd.f32 %v354, %v355
      %v357 = vrot.slane %v356, 1
      %v358 = vadd.f32 %v356, %v357
      %v359 = vadd.f32 %v349, %v358
      %360 = vst [vmem:[%s253] sm:$0x1] %v359
      %s361 = smul.u32 %s20, 2
      %s362 = sadd.s32 %s361, %s21
      %s363 = smul.u32 2, %s362
      %p364 = scmp.lt.s32.totalorder %s363, 7
      %s365 = scalar_select %p364, %s363, 7
      %s366 = smul.addr %s365, 4
      %s367 = scalar_lea.vmem %s2, %s366
      %p368 = scmp.lt.s32.totalorder %s20, 1
      %s369 = scalar_select %p368, %s20, 1
      %s370 = scalar_lea.vmem %s3, %s369
      %p371 = scmp.lt.s32.totalorder %s20, 1
      %s372 = scalar_select %p371, %s20, 1
      %s373 = scalar_lea.vmem %s4, %s372
      // Predicated region
      $region33: #{decoder_block_forward.3} parent=27 // pred_check
        %p374 = pneg %p101
      $region34: #{decoder_block_forward.3} parent=27 // pred_check_branch
        %376 = sbr.rel (%p374) target = $region36
      $region35: #{decoder_block_forward.3} parent=27 // pred_region
        %s377 = smul.u32 %s20, 2
        %s378 = sadd.s32 %s377, %s21
        %s379 = smul.u32 2, %s378
      $region36: #{decoder_block_forward.3} parent=27 // pred_fallthru
        _
      // Predicated region
      $region37: #{decoder_block_forward.3} parent=27 // pred_check
        %p380 = pneg %p127
      $region38: #{decoder_block_forward.3} parent=27 // pred_check_branch
        %382 = sbr.rel (%p380) target = $region40
      $region39: #{decoder_block_forward.3} parent=27 // pred_region
        _
      $region40: #{decoder_block_forward.3} parent=27 // pred_fallthru
        _
      // Predicated region
      $region41: #{decoder_block_forward.3} parent=27 // pred_check
        %p383 = pneg %p153
      $region42: #{decoder_block_forward.3} parent=27 // pred_check_branch
        %385 = sbr.rel (%p383) target = $region44
      $region43: #{decoder_block_forward.3} parent=27 // pred_region
        _
      $region44: #{decoder_block_forward.3} parent=27 // pred_fallthru
        _
    $region28: #{decoder_block_forward.3} parent=5 // pred_fallthru
      _
    %p386 = scmp.le.s32.totalorder 2, %s11
    // Predicated region
    $region45: #{decoder_block_forward.3} parent=5 // pred_check
      %p387 = pneg %p386
    $region46: #{decoder_block_forward.3} parent=5 // pred_check_branch
      %389 = sbr.rel (%p387) target = $region48
    $region47: #{decoder_block_forward.3} parent=5 // pred_region
      %s390 = ssub.s32 %s11, 2
      // Predicated region
      $region49: #{decoder_block_forward.3} parent=47 // pred_check
        %p391 = pneg %p107
      $region50: #{decoder_block_forward.3} parent=47 // pred_check_branch
        %393 = sbr.rel (%p391) target = $region52
      $region51: #{decoder_block_forward.3} parent=47 // pred_region
        %s394 = smul.u32 %s22, 2
        %s395 = sadd.s32 %s394, %s23
        %s396 = smul.u32 2, %s395
        %p397 = scmp.lt.s32.totalorder %s396, 7
        %s398 = scalar_select %p397, %s396, 7
        %s399 = smul.addr %s398, 4
        %s400 = scalar_lea.vmem %s2, %s399
      $region52: #{decoder_block_forward.3} parent=47 // pred_fallthru
        _
      // Predicated region
      $region53: #{decoder_block_forward.3} parent=47 // pred_check
        %p401 = pneg %p133
      $region54: #{decoder_block_forward.3} parent=47 // pred_check_branch
        %403 = sbr.rel (%p401) target = $region56
      $region55: #{decoder_block_forward.3} parent=47 // pred_region
        %p404 = scmp.lt.s32.totalorder %s22, 1
        %s405 = scalar_select %p404, %s22, 1
        %s406 = scalar_lea.vmem %s3, %s405
      $region56: #{decoder_block_forward.3} parent=47 // pred_fallthru
        _
      // Predicated region
      $region57: #{decoder_block_forward.3} parent=47 // pred_check
        %p407 = pneg %p159
      $region58: #{decoder_block_forward.3} parent=47 // pred_check_branch
        %409 = sbr.rel (%p407) target = $region60
      $region59: #{decoder_block_forward.3} parent=47 // pred_region
        %p410 = scmp.lt.s32.totalorder %s22, 1
        %s411 = scalar_select %p410, %s22, 1
        %s412 = scalar_lea.vmem %s4, %s411
      $region60: #{decoder_block_forward.3} parent=47 // pred_fallthru
        _
    $region48: #{decoder_block_forward.3} parent=5 // pred_fallthru
      _
  $region6: #{decoder_block_forward.3} parent=0 // loop_footer
    %s15 = sadd.s32 1, %s11
  $region7: #{decoder_block_forward.3} parent=0 // loop_footer_branch
    %10 = sbr.rel target = $region3
  $region8: #{decoder_block_forward.3} parent=0 // loop_exit
    _

// kernel: decoder_block_forward.5
$region0: #{decoder_block_forward.5}
  #allocation0 [shape = 'u32[]', space=smem, size = 0x4, offset = 0x4, fixed_abs, tag = 'smem constant byte address 0x4 - core index']
  #allocation1 [shape = 'u32[144,128]{1,0:T(1,128)}', space=vmem, size = 0x12000, scoped, tag = 'internal scratch']
  %s0 = inlined_call_operand.vmem [shape: bf16[64,128], index: 0, kind: input, shape index: {}]
  %s1 = inlined_call_operand.vmem [shape: f32[1,128], index: 1, kind: input, shape index: {}]
  %s2 = inlined_call_operand.vmem [shape: f32[1,128], index: 2, kind: input, shape index: {}]
  %s3 = inlined_call_operand.vmem [shape: bf16[128,3], index: 3, kind: input, shape index: {}]
  %s4 = inlined_call_operand.vmem [shape: f32[64,3], index: 4, kind: output, shape index: {}]
  %s5 = sld [smem:[#allocation0]]
  $region49: #{decoder_block_forward.5} parent=0
    _
  %s7 = ssub.s32 1, %s5
  %s8 = scalar_select 0, %s7, %s5
  loop: start=0, step=1, limit=6
  $region2: #{decoder_block_forward.5} parent=0 // loop_pre_header
    _
  $region3: #{decoder_block_forward.5} parent=0 // loop_header
    %s10 = sphi 0, %s14
    %p11 = scmp.ge.s32.totalorder %s10, 6
    %s20 = sphi 0, %s22
    %s23 = sphi 0, %s20
    %s24 = sphi 0, %s23
    %s40 = sphi 0, %s24
    %s44 = sphi 0, %s44
    %s46 = sphi 0, %s44
    %s47 = sphi 0, %s46
    %s61 = sphi 0, %s47
    %s65 = sphi 0, %s65
    %s67 = sphi 0, %s65
    %s68 = sphi 0, %s67
    %s82 = sphi 0, %s68
    %s86 = sphi 0, %s86
    %s88 = sphi 0, %s86
    %s89 = sphi 0, %s88
    %s103 = sphi 0, %s89
    %s109 = sphi 0, %s111
    %s112 = sphi 0, %s109
    %s113 = sphi 0, %s112
    %s129 = sphi 0, %s113
  $region4: #{decoder_block_forward.5} parent=0 // loop_header_branch
    %13 = sbr.rel (%p11) target = $region8
  $region5: #{decoder_block_forward.5} parent=0 // loop_body
    %s15 = ssub.s32 %s10, 1
    %s16 = ssub.s32 %s10, 2
    %s17 = sadd.s32 %s10, 1
    %s18 = ssub.s32 %s10, %s17
    %p19 = scmp.eq.s32.totalorder %s18, 0
    %s21 = sadd.s32 %s20, 1
    %s22 = scalar_select %p19, %s20, %s21
    %p25 = pneg %p19
    %p26 = scmp.eq.s32.totalorder %s10, 3
    %p27 = por %p25, %p26
    %p28 = scmp.ne.s32.totalorder %s20, %s23
    %p29 = scmp.eq.s32.totalorder %s10, 0
    %p30 = por %p28, %p29
    %p31 = scmp.ne.s32.totalorder %s20, %s23
    %p32 = scmp.eq.s32.totalorder %s15, 3
    %p33 = por %p31, %p32
    %p34 = scmp.ne.s32.totalorder %s23, %s24
    %p35 = scmp.eq.s32.totalorder %s15, 0
    %p36 = por %p34, %p35
    %p37 = scmp.ne.s32.totalorder %s23, %s24
    %p38 = scmp.eq.s32.totalorder %s16, 3
    %p39 = por %p37, %p38
    %p41 = scmp.ne.s32.totalorder %s24, %s40
    %p42 = scmp.eq.s32.totalorder %s16, 0
    %p43 = por %p41, %p42
    %s45 = sadd.s32 %s44, 1
    %p48 = scmp.eq.s32.totalorder %s10, 3
    %p49 = scmp.ne.s32.totalorder %s44, %s46
    %p50 = scmp.eq.s32.totalorder %s10, 0
    %p51 = por %p49, %p50
    %p52 = scmp.ne.s32.totalorder %s44, %s46
    %p53 = scmp.eq.s32.totalorder %s15, 3
    %p54 = por %p52, %p53
    %p55 = scmp.ne.s32.totalorder %s46, %s47
    %p56 = scmp.eq.s32.totalorder %s15, 0
    %p57 = por %p55, %p56
    %p58 = scmp.ne.s32.totalorder %s46, %s47
    %p59 = scmp.eq.s32.totalorder %s16, 3
    %p60 = por %p58, %p59
    %p62 = scmp.ne.s32.totalorder %s47, %s61
    %p63 = scmp.eq.s32.totalorder %s16, 0
    %p64 = por %p62, %p63
    %s66 = sadd.s32 %s65, 1
    %p69 = scmp.eq.s32.totalorder %s10, 3
    %p70 = scmp.ne.s32.totalorder %s65, %s67
    %p71 = scmp.eq.s32.totalorder %s10, 0
    %p72 = por %p70, %p71
    %p73 = scmp.ne.s32.totalorder %s65, %s67
    %p74 = scmp.eq.s32.totalorder %s15, 3
    %p75 = por %p73, %p74
    %p76 = scmp.ne.s32.totalorder %s67, %s68
    %p77 = scmp.eq.s32.totalorder %s15, 0
    %p78 = por %p76, %p77
    %p79 = scmp.ne.s32.totalorder %s67, %s68
    %p80 = scmp.eq.s32.totalorder %s16, 3
    %p81 = por %p79, %p80
    %p83 = scmp.ne.s32.totalorder %s68, %s82
    %p84 = scmp.eq.s32.totalorder %s16, 0
    %p85 = por %p83, %p84
    %s87 = sadd.s32 %s86, 1
    %p90 = scmp.eq.s32.totalorder %s10, 3
    %p91 = scmp.ne.s32.totalorder %s86, %s88
    %p92 = scmp.eq.s32.totalorder %s10, 0
    %p93 = por %p91, %p92
    %p94 = scmp.ne.s32.totalorder %s86, %s88
    %p95 = scmp.eq.s32.totalorder %s15, 3
    %p96 = por %p94, %p95
    %p97 = scmp.ne.s32.totalorder %s88, %s89
    %p98 = scmp.eq.s32.totalorder %s15, 0
    %p99 = por %p97, %p98
    %p100 = scmp.ne.s32.totalorder %s88, %s89
    %p101 = scmp.eq.s32.totalorder %s16, 3
    %p102 = por %p100, %p101
    %p104 = scmp.ne.s32.totalorder %s89, %s103
    %p105 = scmp.eq.s32.totalorder %s16, 0
    %p106 = por %p104, %p105
    %s107 = ssub.s32 %s10, %s17
    %p108 = scmp.eq.s32.totalorder %s107, 0
    %s110 = sadd.s32 %s109, 1
    %s111 = scalar_select %p108, %s109, %s110
    %p114 = pneg %p108
    %p115 = scmp.eq.s32.totalorder %s10, 3
    %p116 = por %p114, %p115
    %p117 = scmp.ne.s32.totalorder %s109, %s112
    %p118 = scmp.eq.s32.totalorder %s10, 0
    %p119 = por %p117, %p118
    %p120 = scmp.ne.s32.totalorder %s109, %s112
    %p121 = scmp.eq.s32.totalorder %s15, 3
    %p122 = por %p120, %p121
    %p123 = scmp.ne.s32.totalorder %s112, %s113
    %p124 = scmp.eq.s32.totalorder %s15, 0
    %p125 = por %p123, %p124
    %p126 = scmp.ne.s32.totalorder %s112, %s113
    %p127 = scmp.eq.s32.totalorder %s16, 3
    %p128 = por %p126, %p127
    %p130 = scmp.ne.s32.totalorder %s113, %s129
    %p131 = scmp.eq.s32.totalorder %s16, 0
    %p132 = por %p130, %p131
    %p133 = scmp.le.s32.totalorder 1, %s10
    %p134 = scmp.lt.s32.totalorder %s10, 5
    %p135 = pnand %p133, %p134
    %p136 = pneg %p135
    // Predicated region
    $region9: #{decoder_block_forward.5} parent=5 // pred_check
      _
    $region10: #{decoder_block_forward.5} parent=5 // pred_check_branch
      %138 = sbr.rel (%p135) target = $region12
    $region11: #{decoder_block_forward.5} parent=5 // pred_region
      %s139 = ssub.s32 %s10, 1
      // Predicated region
      $region13: #{decoder_block_forward.5} parent=11 // pred_check
        %p140 = pneg %p57
      $region14: #{decoder_block_forward.5} parent=11 // pred_check_branch
        %142 = sbr.rel (%p140) target = $region16
      $region15: #{decoder_block_forward.5} parent=11 // pred_region
        _
      $region16: #{decoder_block_forward.5} parent=11 // pred_fallthru
        _
      // Predicated region
      $region17: #{decoder_block_forward.5} parent=11 // pred_check
        %p143 = pneg %p78
      $region18: #{decoder_block_forward.5} parent=11 // pred_check_branch
        %145 = sbr.rel (%p143) target = $region20
      $region19: #{decoder_block_forward.5} parent=11 // pred_region
        _
      $region20: #{decoder_block_forward.5} parent=11 // pred_fallthru
        _
      // Predicated region
      $region21: #{decoder_block_forward.5} parent=11 // pred_check
        %p146 = pneg %p99
      $region22: #{decoder_block_forward.5} parent=11 // pred_check_branch
        %148 = sbr.rel (%p146) target = $region24
      $region23: #{decoder_block_forward.5} parent=11 // pred_region
        _
      $region24: #{decoder_block_forward.5} parent=11 // pred_fallthru
        _
    $region12: #{decoder_block_forward.5} parent=5 // pred_fallthru
      _
    %p149 = scmp.lt.s32.totalorder %s10, 4
    // Predicated region
    $region25: #{decoder_block_forward.5} parent=5 // pred_check
      %p150 = pneg %p149
    $region26: #{decoder_block_forward.5} parent=5 // pred_check_branch
      %152 = sbr.rel (%p150) target = $region28
    $region27: #{decoder_block_forward.5} parent=5 // pred_region
      // Predicated region
      $region29: #{decoder_block_forward.5} parent=27 // pred_check
        %p153 = pneg %p30
      $region30: #{decoder_block_forward.5} parent=27 // pred_check_branch
        %155 = sbr.rel (%p153) target = $region32
      $region31: #{decoder_block_forward.5} parent=27 // pred_region
        %s156 = smul.u32 2, %s10
        %p157 = scmp.lt.s32.totalorder %s156, 7
        %s158 = scalar_select %p157, %s156, 7
        %s159 = smul.addr %s158, 4
        %s160 = scalar_lea.vmem %s0, %s159
        %s161 = smul.u32 2, %s10
      $region32: #{decoder_block_forward.5} parent=27 // pred_fallthru
        _
    $region28: #{decoder_block_forward.5} parent=5 // pred_fallthru
      _
    %p162 = scmp.le.s32.totalorder 1, %s10
    %p163 = scmp.lt.s32.totalorder %s10, 5
    %p164 = pnand %p162, %p163
    %p165 = pneg %p164
    // Predicated region
    $region33: #{decoder_block_forward.5} parent=5 // pred_check
      _
    $region34: #{decoder_block_forward.5} parent=5 // pred_check_branch
      %167 = sbr.rel (%p164) target = $region36
    $region35: #{decoder_block_forward.5} parent=5 // pred_region
      %s168 = ssub.s32 %s10, 1
      %s169 = smul.u32 2, %s15
      %p170 = scmp.lt.s32.totalorder %s169, 7
      %s171 = scalar_select %p170, %s169, 7
      %s172 = smul.addr %s171, 4
      %s173 = scalar_lea.vmem %s0, %s172
      %p174 = pneg %p36
      %p175 = pneg %p33
      %p176 = pneg %p57
      %p177 = pneg %p54
      %p178 = pneg %p78
      %p179 = pneg %p75
      %p180 = pneg %p99
      %p181 = pneg %p96
      %p182 = pneg %p125
      %p183 = pneg %p122
      %s184 = smul.u32 2, %s15
      %p185 = scmp.lt.s32.totalorder %s184, 7
      %s186 = scalar_select %p185, %s184, 7
      %s187 = smul.addr %s186, 8
      %s188 = scalar_lea.vmem %s4, %s187
      %s189 = smul.u32 2, %s15
      %p190 = scmp.lt.s32.totalorder %s189, 7
      %s191 = scalar_select %p190, %s189, 7
      %s192 = smul.addr %s191, 4
      %s193 = scalar_lea.vmem %s0, %s192
      %s194 = smul.u32 2, %s15
      %s195 = smul.u32 2, %s15
      %p196 = scmp.lt.s32.totalorder %s195, 7
      %s197 = scalar_select %p196, %s195, 7
      %s198 = smul.addr %s197, 8
      %s199 = scalar_lea.vmem %s4, %s198
      %s200 = smul.u32 2, %s15
      %v202 = vld [vmem:[%s193] sm:$0xf]
      %v203 = vld [vmem:[%s193 + $0x4] sm:$0xf]
      %v204 = vunpack.c.l.bf16 %v202
      %v205 = vunpack.c.l.bf16 %v203
      %v206 = vld [vmem:[%s1] sm:$0x1]
      %v208 = vlaneseq
      %v209 = vshrl.u32 %v208, 7
      %v210 = vsub.s32 0, %v209
      %v211 = vrot.slane %v206, %v210
      %v213 = vmul.f32 %v204, %v211
      %v214 = vmul.f32 %v205, %v211
      %v215 = vld [vmem:[%s2] sm:$0x1]
      %v217 = vlaneseq
      %v218 = vshrl.u32 %v217, 7
      %v219 = vsub.s32 0, %v218
      %v220 = vrot.slane %v215, %v219
      %v222 = vadd.f32 %v213, %v220
      %v223 = vadd.f32 %v214, %v220
      %v224 = vmax.f32 %v222, 0.0
      %v225 = vmax.f32 %v223, 0.0
      %v226 = vpack.c.bf16 %v225, %v224
      %v227 = vld [vmem:[%s3] sm:$0xf]
      %v228 = vld [vmem:[%s3 + $0x4] sm:$0xf]
      %v229 = vld [vmem:[%s3 + $0x8] sm:$0xf]
      %v230 = vld [vmem:[%s3 + $0xc] sm:$0xf]
      %v231 = vld [vmem:[%s3 + $0x10] sm:$0xf]
      %v232 = vld [vmem:[%s3 + $0x14] sm:$0xf]
      %v233 = vld [vmem:[%s3 + $0x18] sm:$0xf]
      %v234 = vld [vmem:[%s3 + $0x1c] sm:$0xf]
      %v235 = vld [vmem:[%s3 + $0x20] sm:$0xf]
      %v236 = vld [vmem:[%s3 + $0x24] sm:$0xf]
      %v237 = vld [vmem:[%s3 + $0x28] sm:$0xf]
      %v238 = vld [vmem:[%s3 + $0x2c] sm:$0xf]
      %v239 = vld [vmem:[%s3 + $0x30] sm:$0xf]
      %v240 = vld [vmem:[%s3 + $0x34] sm:$0xf]
      %v241 = vld [vmem:[%s3 + $0x38] sm:$0xf]
      %v242 = vld [vmem:[%s3 + $0x3c] sm:$0xf]
      %v259 = vunpack.c.l.b16 %v227
      %v260 = vunpack.c.l.b16 %v228
      %v261 = vunpack.c.l.b16 %v229
      %v262 = vunpack.c.l.b16 %v230
      %v263 = vunpack.c.l.b16 %v231
      %v264 = vunpack.c.l.b16 %v232
      %v265 = vunpack.c.l.b16 %v233
      %v266 = vunpack.c.l.b16 %v234
      %v267 = vunpack.c.l.b16 %v235
      %v268 = vunpack.c.l.b16 %v236
      %v269 = vunpack.c.l.b16 %v237
      %v270 = vunpack.c.l.b16 %v238
      %v271 = vunpack.c.l.b16 %v239
      %v272 = vunpack.c.l.b16 %v240
      %v273 = vunpack.c.l.b16 %v241
      %v274 = vunpack.c.l.b16 %v242
      %v275 = vpack.c.b16 %v260, %v259
      %v276 = vpack.c.b16 %v262, %v261
      %v277 = vpack.c.b16 %v264, %v263
      %v278 = vpack.c.b16 %v266, %v265
      %v279 = vpack.c.b16 %v268, %v267
      %v280 = vpack.c.b16 %v270, %v269
      %v281 = vpack.c.b16 %v272, %v271
      %v282 = vpack.c.b16 %v274, %v273
      %291 = vmatprep.subr.bf16.mxu0 0
      %292 = vmatpush1.bf16.msra.mxu0 %v282
      %293 = vmatprep.subr.bf16.mxu0 0
      %294 = vmatpush1.bf16.msra.mxu0 %v281
      %295 = vmatprep.subr.bf16.mxu0 0
      %296 = vmatpush1.bf16.msra.mxu0 %v280
      %297 = vmatprep.subr.bf16.mxu0 0
      %298 = vmatpush1.bf16.msra.mxu0 %v279
      %299 = vmatprep.subr.bf16.mxu0 0
      %300 = vmatpush1.bf16.msra.mxu0 %v278
      %301 = vmatprep.subr.bf16.mxu0 0
      %302 = vmatpush1.bf16.msra.mxu0 %v277
      %303 = vmatprep.subr.bf16.mxu0 0
      %304 = vmatpush1.bf16.msra.mxu0 %v276
      %305 = vmatprep.subr.bf16.mxu0 0
      %306 = vmatpush1.bf16.msra.mxu0 %v275
      %307 = vmatprep.subr.bf16.mxu0 0
      %308 = vmatpush2.bf16.msra.mxu0 0
      %309 = vmatprep.subr.bf16.mxu0 0
      %310 = vmatpush2.bf16.msra.mxu0 0
      %311 = vmatprep.subr.bf16.mxu0 0
      %312 = vmatpush2.bf16.msra.mxu0 0
      %313 = vmatprep.subr.bf16.mxu0 0
      %314 = vmatpush2.bf16.msra.mxu0 0
      %315 = vmatprep.subr.bf16.mxu0 0
      %316 = vmatpush2.bf16.msra.mxu0 0
      %317 = vmatprep.subr.bf16.mxu0 0
      %318 = vmatpush2.bf16.msra.mxu0 0
      %319 = vmatprep.subr.bf16.mxu0 0
      %320 = vmatpush2.bf16.msra.mxu0 0
      %321 = vmatprep.subr.bf16.mxu0 0
      %322 = vmatpush2.bf16.msra.mxu0 0
      %323 = vmatprep.mubr.bf16.mxu0 0
      %324 = vmatmul.mubr.bf16.gmra.mxu0 %v226
      %v325 = vpop.f32.mrf.mxu0
      %v326 = vadd.f32 0.0, %v325
      %v327 = vpop.f32.mrf.mxu0
      %v328 = vpop.f32.mrf.mxu0
      %v329 = vadd.f32 0.0, %v328
      %v330 = vpop.f32.mrf.mxu0
      %331 = vdwg.mxu0
      %vm332 = vcmask 23552
      %333 = vst.msk [vmem:[%s199] sm:$0xff] %vm332, %v326
      %334 = vst.msk [vmem:[%s199 + $0x8] sm:$0xff] %vm332, %v329
      %s335 = smul.u32 2, %s15
      %p336 = scmp.lt.s32.totalorder %s335, 7
      %s337 = scalar_select %p336, %s335, 7
      %s338 = smul.addr %s337, 8
      %s339 = scalar_lea.vmem %s4, %s338
      // Predicated region
      $region37: #{decoder_block_forward.5} parent=35 // pred_check
        %p340 = pneg %p122
      $region38: #{decoder_block_forward.5} parent=35 // pred_check_branch
        %342 = sbr.rel (%p340) target = $region40
      $region39: #{decoder_block_forward.5} parent=35 // pred_region
        %s343 = smul.u32 2, %s15
      $region40: #{decoder_block_forward.5} parent=35 // pred_fallthru
        _
    $region36: #{decoder_block_forward.5} parent=5 // pred_fallthru
      _
    %p344 = scmp.le.s32.totalorder 2, %s10
    // Predicated region
    $region41: #{decoder_block_forward.5} parent=5 // pred_check
      %p345 = pneg %p344
    $region42: #{decoder_block_forward.5} parent=5 // pred_check_branch
      %347 = sbr.rel (%p345) target = $region44
    $region43: #{decoder_block_forward.5} parent=5 // pred_region
      %s348 = ssub.s32 %s10, 2
      // Predicated region
      $region45: #{decoder_block_forward.5} parent=43 // pred_check
        %p349 = pneg %p128
      $region46: #{decoder_block_forward.5} parent=43 // pred_check_branch
        %351 = sbr.rel (%p349) target = $region48
      $region47: #{decoder_block_forward.5} parent=43 // pred_region
        %s352 = smul.u32 2, %s16
        %p353 = scmp.lt.s32.totalorder %s352, 7
        %s354 = scalar_select %p353, %s352, 7
        %s355 = smul.addr %s354, 8
        %s356 = scalar_lea.vmem %s4, %s355
      $region48: #{decoder_block_forward.5} parent=43 // pred_fallthru
        _
    $region44: #{decoder_block_forward.5} parent=5 // pred_fallthru
      _
  $region6: #{decoder_block_forward.5} parent=0 // loop_footer
    %s14 = sadd.s32 1, %s10
  $region7: #{decoder_block_forward.5} parent=0 // loop_footer_branch
    %9 = sbr.rel target = $region3
  $region8: #{decoder_block_forward.5} parent=0 // loop_exit
    _

// kernel: decoder_block_forward.4
$region0: #{decoder_block_forward.4}
  #allocation0 [shape = 'u32[]', space=smem, size = 0x4, offset = 0x4, fixed_abs, tag = 'smem constant byte address 0x4 - core index']
  #allocation1 [shape = 'u32[144,128]{1,0:T(1,128)}', space=vmem, size = 0x12000, scoped, tag = 'internal scratch']
  %s0 = inlined_call_operand.vmem [shape: bf16[64,128], index: 0, kind: input, shape index: {}]
  %s1 = inlined_call_operand.vmem [shape: f32[1,128], index: 1, kind: input, shape index: {}]
  %s2 = inlined_call_operand.vmem [shape: f32[1,128], index: 2, kind: input, shape index: {}]
  %s3 = inlined_call_operand.vmem [shape: bf16[128,128], index: 3, kind: input, shape index: {}]
  %s4 = inlined_call_operand.vmem [shape: bf16[64,128], index: 4, kind: output, shape index: {0}]
  %s5 = inlined_call_operand.vmem [shape: f32[2,1,128], index: 5, kind: output, shape index: {1}]
  %s6 = inlined_call_operand.vmem [shape: f32[2,1,128], index: 6, kind: output, shape index: {2}]
  %7 = xla_tuple %s4, %s5, %s6
  %s8 = sld [smem:[#allocation0]]
  $region77: #{decoder_block_forward.4} parent=0
    _
  %s10 = ssub.s32 1, %s8
  %s11 = scalar_select 0, %s10, %s8
  loop: start=0, step=1, limit=6
  $region2: #{decoder_block_forward.4} parent=0 // loop_pre_header
    _
  $region3: #{decoder_block_forward.4} parent=0 // loop_header
    %s13 = sphi 0, %s17
    %p14 = scmp.ge.s32.totalorder %s13, 6
    %s20 = sphi 0, %s32
    %s21 = sphi 0, %s28
    %s22 = sphi 0, %s20
    %s23 = sphi 0, %s21
    %s24 = sphi 0, %s22
    %s25 = sphi 0, %s23
    %s39 = sphi 0, %s41
    %s42 = sphi 0, %s39
    %s43 = sphi 0, %s42
    %s59 = sphi 0, %s43
    %s63 = sphi 0, %s63
    %s65 = sphi 0, %s63
    %s66 = sphi 0, %s65
    %s80 = sphi 0, %s66
    %s84 = sphi 0, %s84
    %s86 = sphi 0, %s84
    %s87 = sphi 0, %s86
    %s101 = sphi 0, %s87
    %s105 = sphi 0, %s105
    %s107 = sphi 0, %s105
    %s108 = sphi 0, %s107
    %s122 = sphi 0, %s108
    %s132 = sphi 0, %s134
    %s135 = sphi 0, %s132
    %s136 = sphi 0, %s135
    %s152 = sphi 0, %s136
    %s158 = sphi 0, %s160
    %s161 = sphi 0, %s158
    %s162 = sphi 0, %s161
    %s178 = sphi 0, %s162
    %s184 = sphi 0, %s186
    %s187 = sphi 0, %s184
    %s188 = sphi 0, %s187
    %s204 = sphi 0, %s188
  $region4: #{decoder_block_forward.4} parent=0 // loop_header_branch
    %16 = sbr.rel (%p14) target = $region8
  $region5: #{decoder_block_forward.4} parent=0 // loop_body
    %s18 = ssub.s32 %s13, 1
    %s19 = ssub.s32 %s13, 2
    %s26 = sadd.s32 1, %s21
    %p27 = scmp.ge.s32.totalorder %s26, 2
    %s28 = scalar_select %p27, 0, %s26
    %s29 = sadd.s32 1, %s20
    %s30 = scalar_select %p27, %s29, %s20
    %p31 = scmp.ge.s32.totalorder %s30, 2
    %s32 = scalar_select %p31, 0, %s30
    %s33 = smul.u32 %s20, 2
    %s34 = sadd.s32 %s33, %s21
    %s35 = smul.u32 %s32, 2
    %s36 = sadd.s32 %s35, %s28
    %s37 = ssub.s32 %s34, %s36
    %p38 = scmp.eq.s32.totalorder %s37, 0
    %s40 = sadd.s32 %s39, 1
    %s41 = scalar_select %p38, %s39, %s40
    %p44 = pneg %p38
    %p45 = scmp.eq.s32.totalorder %s13, 3
    %p46 = por %p44, %p45
    %p47 = scmp.ne.s32.totalorder %s39, %s42
    %p48 = scmp.eq.s32.totalorder %s13, 0
    %p49 = por %p47, %p48
    %p50 = scmp.ne.s32.totalorder %s39, %s42
    %p51 = scmp.eq.s32.totalorder %s18, 3
    %p52 = por %p50, %p51
    %p53 = scmp.ne.s32.totalorder %s42, %s43
    %p54 = scmp.eq.s32.totalorder %s18, 0
    %p55 = por %p53, %p54
    %p56 = scmp.ne.s32.totalorder %s42, %s43
    %p57 = scmp.eq.s32.totalorder %s19, 3
    %p58 = por %p56, %p57
    %p60 = scmp.ne.s32.totalorder %s43, %s59
    %p61 = scmp.eq.s32.totalorder %s19, 0
    %p62 = por %p60, %p61
    %s64 = sadd.s32 %s63, 1
    %p67 = scmp.eq.s32.totalorder %s13, 3
    %p68 = scmp.ne.s32.totalorder %s63, %s65
    %p69 = scmp.eq.s32.totalorder %s13, 0
    %p70 = por %p68, %p69
    %p71 = scmp.ne.s32.totalorder %s63, %s65
    %p72 = scmp.eq.s32.totalorder %s18, 3
    %p73 = por %p71, %p72
    %p74 = scmp.ne.s32.totalorder %s65, %s66
    %p75 = scmp.eq.s32.totalorder %s18, 0
    %p76 = por %p74, %p75
    %p77 = scmp.ne.s32.totalorder %s65, %s66
    %p78 = scmp.eq.s32.totalorder %s19, 3
    %p79 = por %p77, %p78
    %p81 = scmp.ne.s32.totalorder %s66, %s80
    %p82 = scmp.eq.s32.totalorder %s19, 0
    %p83 = por %p81, %p82
    %s85 = sadd.s32 %s84, 1
    %p88 = scmp.eq.s32.totalorder %s13, 3
    %p89 = scmp.ne.s32.totalorder %s84, %s86
    %p90 = scmp.eq.s32.totalorder %s13, 0
    %p91 = por %p89, %p90
    %p92 = scmp.ne.s32.totalorder %s84, %s86
    %p93 = scmp.eq.s32.totalorder %s18, 3
    %p94 = por %p92, %p93
    %p95 = scmp.ne.s32.totalorder %s86, %s87
    %p96 = scmp.eq.s32.totalorder %s18, 0
    %p97 = por %p95, %p96
    %p98 = scmp.ne.s32.totalorder %s86, %s87
    %p99 = scmp.eq.s32.totalorder %s19, 3
    %p100 = por %p98, %p99
    %p102 = scmp.ne.s32.totalorder %s87, %s101
    %p103 = scmp.eq.s32.totalorder %s19, 0
    %p104 = por %p102, %p103
    %s106 = sadd.s32 %s105, 1
    %p109 = scmp.eq.s32.totalorder %s13, 3
    %p110 = scmp.ne.s32.totalorder %s105, %s107
    %p111 = scmp.eq.s32.totalorder %s13, 0
    %p112 = por %p110, %p111
    %p113 = scmp.ne.s32.totalorder %s105, %s107
    %p114 = scmp.eq.s32.totalorder %s18, 3
    %p115 = por %p113, %p114
    %p116 = scmp.ne.s32.totalorder %s107, %s108
    %p117 = scmp.eq.s32.totalorder %s18, 0
    %p118 = por %p116, %p117
    %p119 = scmp.ne.s32.totalorder %s107, %s108
    %p120 = scmp.eq.s32.totalorder %s19, 3
    %p121 = por %p119, %p120
    %p123 = scmp.ne.s32.totalorder %s108, %s122
    %p124 = scmp.eq.s32.totalorder %s19, 0
    %p125 = por %p123, %p124
    %s126 = smul.u32 %s20, 2
    %s127 = sadd.s32 %s126, %s21
    %s128 = smul.u32 %s32, 2
    %s129 = sadd.s32 %s128, %s28
    %s130 = ssub.s32 %s127, %s129
    %p131 = scmp.eq.s32.totalorder %s130, 0
    %s133 = sadd.s32 %s132, 1
    %s134 = scalar_select %p131, %s132, %s133
    %p137 = pneg %p131
    %p138 = scmp.eq.s32.totalorder %s13, 3
    %p139 = por %p137, %p138
    %p140 = scmp.ne.s32.totalorder %s132, %s135
    %p141 = scmp.eq.s32.totalorder %s13, 0
    %p142 = por %p140, %p141
    %p143 = scmp.ne.s32.totalorder %s132, %s135
    %p144 = scmp.eq.s32.totalorder %s18, 3
    %p145 = por %p143, %p144
    %p146 = scmp.ne.s32.totalorder %s135, %s136
    %p147 = scmp.eq.s32.totalorder %s18, 0
    %p148 = por %p146, %p147
    %p149 = scmp.ne.s32.totalorder %s135, %s136
    %p150 = scmp.eq.s32.totalorder %s19, 3
    %p151 = por %p149, %p150
    %p153 = scmp.ne.s32.totalorder %s136, %s152
    %p154 = scmp.eq.s32.totalorder %s19, 0
    %p155 = por %p153, %p154
    %s156 = ssub.s32 %s20, %s32
    %p157 = scmp.eq.s32.totalorder %s156, 0
    %s159 = sadd.s32 %s158, 1
    %s160 = scalar_select %p157, %s158, %s159
    %p163 = pneg %p157
    %p164 = scmp.eq.s32.totalorder %s13, 3
    %p165 = por %p163, %p164
    %p166 = scmp.ne.s32.totalorder %s158, %s161
    %p167 = scmp.eq.s32.totalorder %s13, 0
    %p168 = por %p166, %p167
    %p169 = scmp.ne.s32.totalorder %s158, %s161
    %p170 = scmp.eq.s32.totalorder %s18, 3
    %p171 = por %p169, %p170
    %p172 = scmp.ne.s32.totalorder %s161, %s162
    %p173 = scmp.eq.s32.totalorder %s18, 0
    %p174 = por %p172, %p173
    %p175 = scmp.ne.s32.totalorder %s161, %s162
    %p176 = scmp.eq.s32.totalorder %s19, 3
    %p177 = por %p175, %p176
    %p179 = scmp.ne.s32.totalorder %s162, %s178
    %p180 = scmp.eq.s32.totalorder %s19, 0
    %p181 = por %p179, %p180
    %s182 = ssub.s32 %s20, %s32
    %p183 = scmp.eq.s32.totalorder %s182, 0
    %s185 = sadd.s32 %s184, 1
    %s186 = scalar_select %p183, %s184, %s185
    %p189 = pneg %p183
    %p190 = scmp.eq.s32.totalorder %s13, 3
    %p191 = por %p189, %p190
    %p192 = scmp.ne.s32.totalorder %s184, %s187
    %p193 = scmp.eq.s32.totalorder %s13, 0
    %p194 = por %p192, %p193
    %p195 = scmp.ne.s32.totalorder %s184, %s187
    %p196 = scmp.eq.s32.totalorder %s18, 3
    %p197 = por %p195, %p196
    %p198 = scmp.ne.s32.totalorder %s187, %s188
    %p199 = scmp.eq.s32.totalorder %s18, 0
    %p200 = por %p198, %p199
    %p201 = scmp.ne.s32.totalorder %s187, %s188
    %p202 = scmp.eq.s32.totalorder %s19, 3
    %p203 = por %p201, %p202
    %p205 = scmp.ne.s32.totalorder %s188, %s204
    %p206 = scmp.eq.s32.totalorder %s19, 0
    %p207 = por %p205, %p206
    %p208 = scmp.le.s32.totalorder 1, %s13
    %p209 = scmp.lt.s32.totalorder %s13, 5
    %p210 = pnand %p208, %p209
    %p211 = pneg %p210
    // Predicated region
    $region9: #{decoder_block_forward.4} parent=5 // pred_check
      _
    $region10: #{decoder_block_forward.4} parent=5 // pred_check_branch
      %213 = sbr.rel (%p210) target = $region12
    $region11: #{decoder_block_forward.4} parent=5 // pred_region
      %s214 = ssub.s32 %s13, 1
      // Predicated region
      $region13: #{decoder_block_forward.4} parent=11 // pred_check
        %p215 = pneg %p76
      $region14: #{decoder_block_forward.4} parent=11 // pred_check_branch
        %217 = sbr.rel (%p215) target = $region16
      $region15: #{decoder_block_forward.4} parent=11 // pred_region
        _
      $region16: #{decoder_block_forward.4} parent=11 // pred_fallthru
        _
      // Predicated region
      $region17: #{decoder_block_forward.4} parent=11 // pred_check
        %p218 = pneg %p97
      $region18: #{decoder_block_forward.4} parent=11 // pred_check_branch
        %220 = sbr.rel (%p218) target = $region20
      $region19: #{decoder_block_forward.4} parent=11 // pred_region
        _
      $region20: #{decoder_block_forward.4} parent=11 // pred_fallthru
        _
      // Predicated region
      $region21: #{decoder_block_forward.4} parent=11 // pred_check
        %p221 = pneg %p118
      $region22: #{decoder_block_forward.4} parent=11 // pred_check_branch
        %223 = sbr.rel (%p221) target = $region24
      $region23: #{decoder_block_forward.4} parent=11 // pred_region
        _
      $region24: #{decoder_block_forward.4} parent=11 // pred_fallthru
        _
    $region12: #{decoder_block_forward.4} parent=5 // pred_fallthru
      _
    %p224 = scmp.lt.s32.totalorder %s13, 4
    // Predicated region
    $region25: #{decoder_block_forward.4} parent=5 // pred_check
      %p225 = pneg %p224
    $region26: #{decoder_block_forward.4} parent=5 // pred_check_branch
      %227 = sbr.rel (%p225) target = $region28
    $region27: #{decoder_block_forward.4} parent=5 // pred_region
      // Predicated region
      $region29: #{decoder_block_forward.4} parent=27 // pred_check
        %p228 = pneg %p49
      $region30: #{decoder_block_forward.4} parent=27 // pred_check_branch
        %230 = sbr.rel (%p228) target = $region32
      $region31: #{decoder_block_forward.4} parent=27 // pred_region
        %s231 = smul.u32 %s20, 2
        %s232 = sadd.s32 %s231, %s21
        %s233 = smul.u32 2, %s232
        %p234 = scmp.lt.s32.totalorder %s233, 7
        %s235 = scalar_select %p234, %s233, 7
        %s236 = smul.addr %s235, 4
        %s237 = scalar_lea.vmem %s0, %s236
        %s238 = smul.u32 %s20, 2
        %s239 = sadd.s32 %s238, %s21
        %s240 = smul.u32 2, %s239
      $region32: #{decoder_block_forward.4} parent=27 // pred_fallthru
        _
    $region28: #{decoder_block_forward.4} parent=5 // pred_fallthru
      _
    %p241 = scmp.le.s32.totalorder 1, %s13
    %p242 = scmp.lt.s32.totalorder %s13, 5
    %p243 = pnand %p241, %p242
    %p244 = pneg %p243
    // Predicated region
    $region33: #{decoder_block_forward.4} parent=5 // pred_check
      _
    $region34: #{decoder_block_forward.4} parent=5 // pred_check_branch
      %246 = sbr.rel (%p243) target = $region36
    $region35: #{decoder_block_forward.4} parent=5 // pred_region
      %s247 = ssub.s32 %s13, 1
      %s248 = smul.u32 %s22, 2
      %s249 = sadd.s32 %s248, %s23
      %s250 = smul.u32 2, %s249
      %p251 = scmp.lt.s32.totalorder %s250, 7
      %s252 = scalar_select %p251, %s250, 7
      %s253 = smul.addr %s252, 4
      %s254 = scalar_lea.vmem %s0, %s253
      %p255 = pneg %p55
      %p256 = pneg %p52
      %p257 = pneg %p76
      %p258 = pneg %p73
      %p259 = pneg %p97
      %p260 = pneg %p94
      %p261 = pneg %p118
      %p262 = pneg %p115
      %p263 = pneg %p148
      %p264 = pneg %p145
      %s265 = smul.u32 %s22, 2
      %s266 = sadd.s32 %s265, %s23
      %s267 = smul.u32 2, %s266
      %p268 = scmp.lt.s32.totalorder %s267, 7
      %s269 = scalar_select %p268, %s267, 7
      %s270 = smul.addr %s269, 4
      %s271 = scalar_lea.vmem %s4, %s270
      %p272 = pneg %p174
      %p273 = pneg %p171
      %p274 = scmp.lt.s32.totalorder %s22, 1
      %s275 = scalar_select %p274, %s22, 1
      %s276 = scalar_lea.vmem %s5, %s275
      %p277 = pneg %p200
      %p278 = pneg %p197
      %p279 = scmp.lt.s32.totalorder %s22, 1
      %s280 = scalar_select %p279, %s22, 1
      %s281 = scalar_lea.vmem %s6, %s280
      %s282 = smul.u32 %s22, 2
      %s283 = sadd.s32 %s282, %s23
      %s284 = smul.u32 2, %s283
      %p285 = scmp.lt.s32.totalorder %s284, 7
      %s286 = scalar_select %p285, %s284, 7
      %s287 = smul.addr %s286, 4
      %s288 = scalar_lea.vmem %s0, %s287
      %s289 = smul.u32 %s22, 2
      %s290 = sadd.s32 %s289, %s23
      %s291 = smul.u32 2, %s290
      %s292 = smul.u32 %s22, 2
      %s293 = sadd.s32 %s292, %s23
      %s294 = smul.u32 2, %s293
      %p295 = scmp.lt.s32.totalorder %s294, 7
      %s296 = scalar_select %p295, %s294, 7
      %s297 = smul.addr %s296, 4
      %s298 = scalar_lea.vmem %s4, %s297
      %s299 = smul.u32 %s22, 2
      %s300 = sadd.s32 %s299, %s23
      %s301 = smul.u32 2, %s300
      %p302 = scmp.lt.s32.totalorder %s22, 1
      %s303 = scalar_select %p302, %s22, 1
      %s304 = scalar_lea.vmem %s5, %s303
      %p305 = scmp.lt.s32.totalorder %s22, 1
      %s306 = scalar_select %p305, %s22, 1
      %s307 = scalar_lea.vmem %s6, %s306
      %v309 = vld [vmem:[%s288] sm:$0xf]
      %v310 = vld [vmem:[%s288 + $0x4] sm:$0xf]
      %v311 = vunpack.c.l.bf16 %v309
      %v312 = vunpack.c.l.bf16 %v310
      %v313 = vld [vmem:[%s1] sm:$0x1]
      %v315 = vlaneseq
      %v316 = vshrl.u32 %v315, 7
      %v317 = vsub.s32 0, %v316
      %v318 = vrot.slane %v313, %v317
      %v320 = vmul.f32 %v311, %v318
      %v321 = vmul.f32 %v312, %v318
      %v322 = vld [vmem:[%s2] sm:$0x1]
      %v324 = vlaneseq
      %v325 = vshrl.u32 %v324, 7
      %v326 = vsub.s32 0, %v325
      %v327 = vrot.slane %v322, %v326
      %v329 = vadd.f32 %v320, %v327
      %v330 = vadd.f32 %v321, %v327
      %v331 = vmax.f32 %v329, 0.0
      %v332 = vmax.f32 %v330, 0.0
      %v333 = vpack.c.bf16 %v332, %v331
      %v334 = vld [vmem:[%s3] sm:$0xf]
      %v335 = vld [vmem:[%s3 + $0x4] sm:$0xf]
      %v336 = vld [vmem:[%s3 + $0x8] sm:$0xf]
      %v337 = vld [vmem:[%s3 + $0xc] sm:$0xf]
      %v338 = vld [vmem:[%s3 + $0x10] sm:$0xf]
      %v339 = vld [vmem:[%s3 + $0x14] sm:$0xf]
      %v340 = vld [vmem:[%s3 + $0x18] sm:$0xf]
      %v341 = vld [vmem:[%s3 + $0x1c] sm:$0xf]
      %v342 = vld [vmem:[%s3 + $0x20] sm:$0xf]
      %v343 = vld [vmem:[%s3 + $0x24] sm:$0xf]
      %v344 = vld [vmem:[%s3 + $0x28] sm:$0xf]
      %v345 = vld [vmem:[%s3 + $0x2c] sm:$0xf]
      %v346 = vld [vmem:[%s3 + $0x30] sm:$0xf]
      %v347 = vld [vmem:[%s3 + $0x34] sm:$0xf]
      %v348 = vld [vmem:[%s3 + $0x38] sm:$0xf]
      %v349 = vld [vmem:[%s3 + $0x3c] sm:$0xf]
      %v366 = vunpack.c.l.b16 %v334
      %v367 = vunpack.c.l.b16 %v335
      %v368 = vunpack.c.l.b16 %v336
      %v369 = vunpack.c.l.b16 %v337
      %v370 = vunpack.c.l.b16 %v338
      %v371 = vunpack.c.l.b16 %v339
      %v372 = vunpack.c.l.b16 %v340
      %v373 = vunpack.c.l.b16 %v341
      %v374 = vunpack.c.l.b16 %v342
      %v375 = vunpack.c.l.b16 %v343
      %v376 = vunpack.c.l.b16 %v344
      %v377 = vunpack.c.l.b16 %v345
      %v378 = vunpack.c.l.b16 %v346
      %v379 = vunpack.c.l.b16 %v347
      %v380 = vunpack.c.l.b16 %v348
      %v381 = vunpack.c.l.b16 %v349
      %v382 = vpack.c.b16 %v367, %v366
      %v383 = vpack.c.b16 %v369, %v368
      %v384 = vpack.c.b16 %v371, %v370
      %v385 = vpack.c.b16 %v373, %v372
      %v386 = vpack.c.b16 %v375, %v374
      %v387 = vpack.c.b16 %v377, %v376
      %v388 = vpack.c.b16 %v379, %v378
      %v389 = vpack.c.b16 %v381, %v380
      %398 = vmatprep.subr.bf16.mxu0 0
      %399 = vmatpush1.bf16.msra.mxu0 %v389
      %400 = vmatprep.subr.bf16.mxu0 0
      %401 = vmatpush1.bf16.msra.mxu0 %v388
      %402 = vmatprep.subr.bf16.mxu0 0
      %403 = vmatpush1.bf16.msra.mxu0 %v387
      %404 = vmatprep.subr.bf16.mxu0 0
      %405 = vmatpush1.bf16.msra.mxu0 %v386
      %406 = vmatprep.subr.bf16.mxu0 0
      %407 = vmatpush1.bf16.msra.mxu0 %v385
      %408 = vmatprep.subr.bf16.mxu0 0
      %409 = vmatpush1.bf16.msra.mxu0 %v384
      %410 = vmatprep.subr.bf16.mxu0 0
      %411 = vmatpush1.bf16.msra.mxu0 %v383
      %412 = vmatprep.subr.bf16.mxu0 0
      %413 = vmatpush1.bf16.msra.mxu0 %v382
      %414 = vmatprep.subr.bf16.mxu0 0
      %415 = vmatpush2.bf16.msra.mxu0 0
      %416 = vmatprep.subr.bf16.mxu0 0
      %417 = vmatpush2.bf16.msra.mxu0 0
      %418 = vmatprep.subr.bf16.mxu0 0
      %419 = vmatpush2.bf16.msra.mxu0 0
      %420 = vmatprep.subr.bf16.mxu0 0
      %421 = vmatpush2.bf16.msra.mxu0 0
      %422 = vmatprep.subr.bf16.mxu0 0
      %423 = vmatpush2.bf16.msra.mxu0 0
      %424 = vmatprep.subr.bf16.mxu0 0
      %425 = vmatpush2.bf16.msra.mxu0 0
      %426 = vmatprep.subr.bf16.mxu0 0
      %427 = vmatpush2.bf16.msra.mxu0 0
      %428 = vmatprep.subr.bf16.mxu0 0
      %429 = vmatpush2.bf16.msra.mxu0 0
      %430 = vmatprep.mubr.bf16.mxu0 0
      %431 = vmatmul.mubr.bf16.gmra.mxu0 %v333
      %v432 = vpop.f32.mrf.mxu0
      %v433 = vadd.f32 0.0, %v432
      %v434 = vpop.f32.mrf.mxu0
      %v435 = vpop.f32.mrf.mxu0
      %v436 = vadd.f32 0.0, %v435
      %v437 = vpop.f32.mrf.mxu0
      %438 = vdwg.mxu0
      %v439 = vpack.c.bf16 %v436, %v433
      %v441 = vunpack.c.l.b16 %v439
      %v442 = vunpack.c.h.b16 %v439
      %v443 = vpack.c.b16 %v441, %v441
      %v444 = vpack.c.b16 %v442, %v442
      %447 = vst [vmem:[%s298] sm:$0xf] %v443
      %448 = vst [vmem:[%s298 + $0x4] sm:$0xf] %v444
      %p449 = scmp.eq.s32.totalorder %s23, 0
      // Predicated region
      $region37: #{decoder_block_forward.4} parent=35 // pred_check
        %p450 = pneg %p449
      $region38: #{decoder_block_forward.4} parent=35 // pred_check_branch
        %452 = sbr.rel (%p450) target = $region40
      $region39: #{decoder_block_forward.4} parent=35 // pred_region
        %453 = vst [vmem:[%s304] sm:$0x1] 0.0
        %454 = vst [vmem:[%s307] sm:$0x1] 0.0
      $region40: #{decoder_block_forward.4} parent=35 // pred_fallthru
        _
      %s455 = smul.u32 %s22, 2
      %s456 = sadd.s32 %s455, %s23
      %s457 = smul.u32 %s456, 16
      %s458 = sadd.s32 %s457, 16
      %p459 = scmp.le.s32.totalorder %s458, 48
      // Predicated region
      $region41: #{decoder_block_forward.4} parent=35 // pred_check
        %p460 = pneg %p459
      $region42: #{decoder_block_forward.4} parent=35 // pred_check_branch
        %462 = sbr.rel (%p460) target = $region44
      $region43: #{decoder_block_forward.4} parent=35 // pred_region
        %v463 = vld [vmem:[%s304] sm:$0x1]
        %v464 = vadd.f32 %v433, %v436
        %v465 = vrot.slane %v464, 4
        %v466 = vadd.f32 %v464, %v465
        %v467 = vrot.slane %v466, 2
        %v468 = vadd.f32 %v466, %v467
        %v469 = vrot.slane %v468, 1
        %v470 = vadd.f32 %v468, %v469
        %v471 = vadd.f32 %v463, %v470
        %472 = vst [vmem:[%s304] sm:$0x1] %v471
        %v473 = vld [vmem:[%s307] sm:$0x1]
        %v474 = vmul.f32 %v433, %v433
        %v475 = vmul.f32 %v436, %v436
        %v476 = vadd.f32 %v474, %v475
        %v477 = vrot.slane %v476, 4
        %v478 = vadd.f32 %v476, %v477
        %v479 = vrot.slane %v478, 2
        %v480 = vadd.f32 %v478, %v479
        %v481 = vrot.slane %v480, 1
        %v482 = vadd.f32 %v480, %v481
        %v483 = vadd.f32 %v473, %v482
        %484 = vst [vmem:[%s307] sm:$0x1] %v483
      $region44: #{decoder_block_forward.4} parent=35 // pred_fallthru
        _
      %p485 = scmp.gt.s32.totalorder %s458, 48
      // Predicated region
      $region45: #{decoder_block_forward.4} parent=35 // pred_check
        %p486 = pneg %p485
      $region46: #{decoder_block_forward.4} parent=35 // pred_check_branch
        %488 = sbr.rel (%p486) target = $region48
      $region47: #{decoder_block_forward.4} parent=35 // pred_region
        %v489 = vlaneseq
        %v490 = vshrl.u32 %v489, 7
        %v491 = vadd.s32 %v490, 8
        %v492 = vstv %s457
        %v493 = vadd.s32 %v492, %v490
        %v494 = vadd.s32 %v492, %v491
        %vm495 = vcmp.lt.s32.totalorder %v493, 48
        %vm496 = vcmp.lt.s32.totalorder %v494, 48
        %v497 = vsel %vm495, 1, 0
        %v498 = vsel %vm496, 1, 0
        %v499 = vcvt.s32.f32 %v497
        %v500 = vcvt.s32.f32 %v498
        %v501 = vmul.f32 %v433, %v499
        %v502 = vmul.f32 %v436, %v500
        %v503 = vld [vmem:[%s304] sm:$0x1]
        %v504 = vadd.f32 %v501, %v502
        %v505 = vrot.slane %v504, 4
        %v506 = vadd.f32 %v504, %v505
        %v507 = vrot.slane %v506, 2
        %v508 = vadd.f32 %v506, %v507
        %v509 = vrot.slane %v508, 1
        %v510 = vadd.f32 %v508, %v509
        %v511 = vadd.f32 %v503, %v510
        %512 = vst [vmem:[%s304] sm:$0x1] %v511
        %v513 = vld [vmem:[%s307] sm:$0x1]
        %v514 = vmul.f32 %v501, %v501
        %v515 = vmul.f32 %v502, %v502
        %v516 = vadd.f32 %v514, %v515
        %v517 = vrot.slane %v516, 4
        %v518 = vadd.f32 %v516, %v517
        %v519 = vrot.slane %v518, 2
        %v520 = vadd.f32 %v518, %v519
        %v521 = vrot.slane %v520, 1
        %v522 = vadd.f32 %v520, %v521
        %v523 = vadd.f32 %v513, %v522
        %524 = vst [vmem:[%s307] sm:$0x1] %v523
      $region48: #{decoder_block_forward.4} parent=35 // pred_fallthru
        _
      %s525 = smul.u32 %s22, 2
      %s526 = sadd.s32 %s525, %s23
      %s527 = smul.u32 2, %s526
      %p528 = scmp.lt.s32.totalorder %s527, 7
      %s529 = scalar_select %p528, %s527, 7
      %s530 = smul.addr %s529, 4
      %s531 = scalar_lea.vmem %s4, %s530
      %p532 = scmp.lt.s32.totalorder %s22, 1
      %s533 = scalar_select %p532, %s22, 1
      %s534 = scalar_lea.vmem %s5, %s533
      %p535 = scmp.lt.s32.totalorder %s22, 1
      %s536 = scalar_select %p535, %s22, 1
      %s537 = scalar_lea.vmem %s6, %s536
      // Predicated region
      $region49: #{decoder_block_forward.4} parent=35 // pred_check
        %p538 = pneg %p145
      $region50: #{decoder_block_forward.4} parent=35 // pred_check_branch
        %540 = sbr.rel (%p538) target = $region52
      $region51: #{decoder_block_forward.4} parent=35 // pred_region
        %s541 = smul.u32 %s22, 2
        %s542 = sadd.s32 %s541, %s23
        %s543 = smul.u32 2, %s542
      $region52: #{decoder_block_forward.4} parent=35 // pred_fallthru
        _
      // Predicated region
      $region53: #{decoder_block_forward.4} parent=35 // pred_check
        %p544 = pneg %p171
      $region54: #{decoder_block_forward.4} parent=35 // pred_check_branch
        %546 = sbr.rel (%p544) target = $region56
      $region55: #{decoder_block_forward.4} parent=35 // pred_region
        _
      $region56: #{decoder_block_forward.4} parent=35 // pred_fallthru
        _
      // Predicated region
      $region57: #{decoder_block_forward.4} parent=35 // pred_check
        %p547 = pneg %p197
      $region58: #{decoder_block_forward.4} parent=35 // pred_check_branch
        %549 = sbr.rel (%p547) target = $region60
      $region59: #{decoder_block_forward.4} parent=35 // pred_region
        _
      $region60: #{decoder_block_forward.4} parent=35 // pred_fallthru
        _
    $region36: #{decoder_block_forward.4} parent=5 // pred_fallthru
      _
    %p550 = scmp.le.s32.totalorder 2, %s13
    // Predicated region
    $region61: #{decoder_block_forward.4} parent=5 // pred_check
      %p551 = pneg %p550
    $region62: #{decoder_block_forward.4} parent=5 // pred_check_branch
      %553 = sbr.rel (%p551) target = $region64
    $region63: #{decoder_block_forward.4} parent=5 // pred_region
      %s554 = ssub.s32 %s13, 2
      // Predicated region
      $region65: #{decoder_block_forward.4} parent=63 // pred_check
        %p555 = pneg %p151
      $region66: #{decoder_block_forward.4} parent=63 // pred_check_branch
        %557 = sbr.rel (%p555) target = $region68
      $region67: #{decoder_block_forward.4} parent=63 // pred_region
        %s558 = smul.u32 %s24, 2
        %s559 = sadd.s32 %s558, %s25
        %s560 = smul.u32 2, %s559
        %p561 = scmp.lt.s32.totalorder %s560, 7
        %s562 = scalar_select %p561, %s560, 7
        %s563 = smul.addr %s562, 4
        %s564 = scalar_lea.vmem %s4, %s563
      $region68: #{decoder_block_forward.4} parent=63 // pred_fallthru
        _
      // Predicated region
      $region69: #{decoder_block_forward.4} parent=63 // pred_check
        %p565 = pneg %p177
      $region70: #{decoder_block_forward.4} parent=63 // pred_check_branch
        %567 = sbr.rel (%p565) target = $region72
      $region71: #{decoder_block_forward.4} parent=63 // pred_region
        %p568 = scmp.lt.s32.totalorder %s24, 1
        %s569 = scalar_select %p568, %s24, 1
        %s570 = scalar_lea.vmem %s5, %s569
      $region72: #{decoder_block_forward.4} parent=63 // pred_fallthru
        _
      // Predicated region
      $region73: #{decoder_block_forward.4} parent=63 // pred_check
        %p571 = pneg %p203
      $region74: #{decoder_block_forward.4} parent=63 // pred_check_branch
        %573 = sbr.rel (%p571) target = $region76
      $region75: #{decoder_block_forward.4} parent=63 // pred_region
        %p574 = scmp.lt.s32.totalorder %s24, 1
        %s575 = scalar_select %p574, %s24, 1
        %s576 = scalar_lea.vmem %s6, %s575
      $region76: #{decoder_block_forward.4} parent=63 // pred_fallthru
        _
    $region64: #{decoder_block_forward.4} parent=5 // pred_fallthru
      _
  $region6: #{decoder_block_forward.4} parent=0 // loop_footer
    %s17 = sadd.s32 1, %s13
  $region7: #{decoder_block_forward.4} parent=0 // loop_footer_branch
    %12 = sbr.rel target = $region3
  $region8: #{decoder_block_forward.4} parent=0 // loop_exit
    _

</llo_original>
